<compile_context>
chip_gen: v7x
topology: tpu7x:2x2x1
jax: 0.10.0
libtpu: 0.0.40
codegen_flags: <defaults>
</compile_context>

<pallas_src>
import math
import functools
import numpy as np

import jax
import jax.numpy as jnp
from jax.experimental import pallas as pl
from jax.experimental.pallas import tpu as pltpu


# --------------------------------------------------------------------------- #
# JAX glue: unfold / fold (exact F.unfold / F.fold semantics)
# --------------------------------------------------------------------------- #
def unfold(x, k, pad, stride):
    """F.unfold: NCHW -> [N, C*k*k, L], patch order (c, kh, kw) with c slowest."""
    N, C, H, W = x.shape
    xp = jnp.pad(x, ((0, 0), (0, 0), (pad, pad), (pad, pad)))
    out_h = (H + 2 * pad - k) // stride + 1
    out_w = (W + 2 * pad - k) // stride + 1
    cols = []
    for i in range(k):
        for j in range(k):
            patch = xp[:, :, i:i + stride * out_h:stride, j:j + stride * out_w:stride]
            cols.append(patch.reshape(N, C, out_h * out_w))
    col = jnp.stack(cols, axis=2)                       # [N, C, k*k, L]
    return col.reshape(N, C * k * k, out_h * out_w)


def fold(cols, out_size, k, pad, stride):
    """F.fold (col2im with overlap-add): [N, C*k*k, L] -> NCHW, f32 accumulation."""
    N, CKK, L = cols.shape
    C = CKK // (k * k)
    H, W = out_size
    out_h = (H + 2 * pad - k) // stride + 1
    out_w = (W + 2 * pad - k) // stride + 1
    assert out_h * out_w == L
    col = cols.reshape(N, C, k, k, out_h, out_w).astype(jnp.float32)
    out = jnp.zeros((N, C, H + 2 * pad, W + 2 * pad), jnp.float32)
    for i in range(k):
        for j in range(k):
            out = out.at[:, :, i:i + stride * out_h:stride,
                         j:j + stride * out_w:stride].add(col[:, :, i, j])
    return out[:, :, pad:pad + H, pad:pad + W]


def _round_up(x, m):
    return (x + m - 1) // m * m


def _vmem_capacity_bytes():
    try:
        return int(pltpu.get_tpu_info().vmem_capacity_bytes)
    except Exception:
        return 64 << 20          # conservative fallback (v7x physical VMEM)


# --------------------------------------------------------------------------- #
# Kernel 1: attention — P[:, tile] = softmax(refsr^T @ lrsr[:, tile] / sqrt(emb))
#   lrsr_ref    : [1, emb_pad, TLa]   bf16
#   refsr_t_ref : [1, L_ref, emb_pad] bf16   (resident per batch)
#   p_ref       : [1, L_ref, TLa]     bf16
# --------------------------------------------------------------------------- #
def _attention_kernel(lrsr_ref, refsr_t_ref, p_ref, *, scale):
    s = jnp.dot(refsr_t_ref[0], lrsr_ref[0],
                preferred_element_type=jnp.float32) * scale
    s = s - jnp.max(s, axis=0, keepdims=True)           # softmax over L_ref (torch dim=1)
    e = jnp.exp(s)
    p = e / jnp.sum(e, axis=0, keepdims=True)            # exact division (runs once/tile)
    p_ref[0] = p.astype(p_ref.dtype)


# --------------------------------------------------------------------------- #
# Kernel 2: transfer — out[row tile, col tile] = ref_all[row tile, :] @ P[:, col tile]
#   refall_ref : [1, TM, L_ref]  bf16
#   p_ref      : [1, L_ref, TL]  bf16   (resident across the row-tile loop)
#   out_ref    : [1, TM, TL]     bf16
# --------------------------------------------------------------------------- #
def _transfer_kernel(refall_ref, p_ref, out_ref):
    out_ref[0] = jnp.dot(refall_ref[0], p_ref[0],
                         preferred_element_type=jnp.float32).astype(out_ref.dtype)


# --------------------------------------------------------------------------- #
# Wrapper (forward pass of SearchTransferSoftAttn)
# --------------------------------------------------------------------------- #
@functools.partial(jax.jit, static_argnames=("return_attention",))
def search_transfer_pallas(lrsr_lv1, lrsr_lv2, lrsr_lv3, refsr_lv3,
                           ref_lv1, ref_lv2, ref_lv3, return_attention=False):
    del lrsr_lv1, lrsr_lv2  # unused by the reference forward pass as well

    N, C3, H3, W3 = lrsr_lv3.shape
    L_lr = H3 * W3
    L_ref = refsr_lv3.shape[2] * refsr_lv3.shape[3]
    emb = C3 * 9                                    # = lrsr_lv3_unfold.size(1)
    scale = 1.0 / math.sqrt(float(emb))

    # --- unfold (im2col), done as JAX glue --------------------------------- #
    lrsr_unf = unfold(lrsr_lv3, 3, 1, 1)            # [N, emb,    L_lr]
    refsr_unf = unfold(refsr_lv3, 3, 1, 1)          # [N, emb,    L_ref]
    ref3_unf = unfold(ref_lv3, 3, 1, 1)             # [N, 9*C3,   L_ref]
    ref2_unf = unfold(ref_lv2, 6, 2, 2)             # [N, 36*C2,  L_ref]
    ref1_unf = unfold(ref_lv1, 12, 4, 4)            # [N, 144*C1, L_ref]
    M3, M2, M1 = ref3_unf.shape[1], ref2_unf.shape[1], ref1_unf.shape[1]
    M_total = M3 + M2 + M1

    # --- tiling: generation-aware, footprint-derived ------------------------ #
    cap = _vmem_capacity_bytes()
    budget = int(cap * 0.60)

    emb_pad = _round_up(emb, 128)                   # lane-aligned contraction dim
    if L_lr <= 512:
        L_lr_pad = _round_up(L_lr, 128)             # small: single lane-dense column
    else:
        L_lr_pad = _round_up(L_lr, 512)             # pad up to the column-tile size

    TM = 1024 if cap >= (100 << 20) else 512        # 128 MiB chips get bigger row tiles
    TL = L_lr_pad                                   # full column: ref_all streamed once

    def transfer_footprint(tm, tl):
        return (2 * tm * L_ref * 2                  # ref_all tile   (bf16, dbl-buffered)
                + 2 * L_ref * tl * 2                # P column tile  (bf16, dbl-buffered)
                + 2 * tm * tl * 2                   # out tile       (bf16, dbl-buffered)
                + 2 * tm * tl * 4)                  # f32 dot-accumulation temporaries

    while transfer_footprint(TM, TL) > budget:
        if TM > 256:
            TM //= 2                                # cheapest lever: per-step overhead only
        elif TL > 512 and (TL // 2) % 128 == 0:
            TL //= 2                                # keep TL >= 512 (>= roofline AI)
        else:
            break

    M_pad = _round_up(M_total, TM)
    TLa = min(L_lr_pad, 512)                        # attention column tile

    att_footprint = (2 * emb_pad * TLa * 2          # lrsr tile
                     + 2 * L_ref * emb_pad * 2      # refsr^T (resident per batch)
                     + 2 * L_ref * TLa * 2          # P out tile
                     + 4 * L_ref * TLa * 4)         # f32 scores / exp temporaries
    vmem_limit = min(cap, max(int(1.4 * max(transfer_footprint(TM, TL),
                                            att_footprint)), 32 << 20))

    # --- pack: pad, transpose refsr, cast matmul operands to bf16 ----------- #
    lrsr_p = jnp.pad(
        lrsr_unf, ((0, 0), (0, emb_pad - emb), (0, L_lr_pad - L_lr))
    ).astype(jnp.bfloat16)                                        # [N, emb_pad, L_lr_pad]
    refsr_t = jnp.pad(
        jnp.swapaxes(refsr_unf, 1, 2), ((0, 0), (0, 0), (0, emb_pad - emb))
    ).astype(jnp.bfloat16)                                        # [N, L_ref, emb_pad]
    ref_all = jnp.concatenate([ref3_unf, ref2_unf, ref1_unf], axis=1)
    ref_all = jnp.pad(
        ref_all, ((0, 0), (0, M_pad - M_total), (0, 0))
    ).astype(jnp.bfloat16)                                        # [N, M_pad, L_ref]

    # --- kernel 1: full attention matrix P (softmax over L_ref) ------------- #
    p_full = pl.pallas_call(
        functools.partial(_attention_kernel, scale=scale),
        out_shape=jax.ShapeDtypeStruct((N, L_ref, L_lr_pad), jnp.bfloat16),
        grid_spec=pltpu.PrefetchScalarGridSpec(
            num_scalar_prefetch=0,
            grid=(N, L_lr_pad // TLa),
            in_specs=[
                pl.BlockSpec((1, emb_pad, TLa), lambda n, c: (n, 0, c)),
                pl.BlockSpec((1, L_ref, emb_pad), lambda n, c: (n, 0, 0)),
            ],
            out_specs=pl.BlockSpec((1, L_ref, TLa), lambda n, c: (n, 0, c)),
        ),
        compiler_params=pltpu.CompilerParams(
            dimension_semantics=("parallel", "parallel"),
            vmem_limit_bytes=vmem_limit,
        ),
    )(lrsr_p, refsr_t)

    # --- kernel 2: transfer matmul; row tiles innermost so the P column tile  #
    #     stays resident and ref_all is streamed exactly once per column tile  #
    #     (= once per batch in the default full-column configuration).         #
    t_all = pl.pallas_call(
        _transfer_kernel,
        out_shape=jax.ShapeDtypeStruct((N, M_pad, L_lr_pad), jnp.bfloat16),
        grid_spec=pltpu.PrefetchScalarGridSpec(
            num_scalar_prefetch=0,
            grid=(N, L_lr_pad // TL, M_pad // TM),
            in_specs=[
                pl.BlockSpec((1, TM, L_ref), lambda n, c, r: (n, r, 0)),
                pl.BlockSpec((1, L_ref, TL), lambda n, c, r: (n, 0, c)),
            ],
            out_specs=pl.BlockSpec((1, TM, TL), lambda n, c, r: (n, r, c)),
        ),
        compiler_params=pltpu.CompilerParams(
            dimension_semantics=("parallel", "parallel", "parallel"),
            vmem_limit_bytes=vmem_limit,
        ),
    )(ref_all, p_full)

    # strip padding, split back into the three levels
    t_all = t_all[:, :M_total, :L_lr]
    t3 = t_all[:, :M3]
    t2 = t_all[:, M3:M3 + M2]
    t1 = t_all[:, M3 + M2:]

    # --- fold (col2im overlap-add) and divide by 3*3, exactly as the spec ---- #
    T_lv3 = fold(t3, (H3, W3), 3, 1, 1) / 9.0
    T_lv2 = fold(t2, (H3 * 2, W3 * 2), 6, 2, 2) / 9.0
    T_lv1 = fold(t1, (H3 * 4, W3 * 4), 12, 4, 4) / 9.0

    if not return_attention:
        return (None, T_lv3, T_lv2, T_lv1)
    # NB: matches the PyTorch module, which also returns None for the attention map.
    return (None, None, T_lv3, T_lv2, T_lv1)


# --------------------------------------------------------------------------- #
# Pure-JAX f32 reference (mirrors the PyTorch forward) for a numerical check
# --------------------------------------------------------------------------- #
def reference_forward(lrsr_lv3, refsr_lv3, ref_lv1, ref_lv2, ref_lv3):
    H3, W3 = lrsr_lv3.shape[2], lrsr_lv3.shape[3]
    lrsr_unf = unfold(lrsr_lv3, 3, 1, 1)
    refsr_unf = unfold(refsr_lv3, 3, 1, 1)
    emb = lrsr_unf.shape[1]
    R = jnp.einsum('ncm,ncl->nml', refsr_unf, lrsr_unf) * (1.0 / math.sqrt(float(emb)))
    R = jax.nn.softmax(R, axis=1)
    t3 = jnp.einsum('nkm,nml->nkl', unfold(ref_lv3, 3, 1, 1), R)
    t2 = jnp.einsum('nkm,nml->nkl', unfold(ref_lv2, 6, 2, 2), R)
    t1 = jnp.einsum('nkm,nml->nkl', unfold(ref_lv1, 12, 4, 4), R)
    T3 = fold(t3, (H3, W3), 3, 1, 1) / 9.0
    T2 = fold(t2, (H3 * 2, W3 * 2), 6, 2, 2) / 9.0
    T1 = fold(t1, (H3 * 4, W3 * 4), 12, 4, 4) / 9.0
    return T3, T2, T1


# --------------------------------------------------------------------------- #
if __name__ == "__main__":
    key = jax.random.PRNGKey(0)
    ks = jax.random.split(key, 7)

    N = 2
    C1, C2, C3 = 16, 32, 64          # lv1 / lv2 / lv3 channel counts
    H3 = W3 = 8                      # LR  lv3 spatial -> L_lr  = 64
    Hr = Wr = 8                      # Ref lv3 spatial -> L_ref = 64

    lrsr_lv1 = jax.random.normal(ks[0], (N, C1, 4 * H3, 4 * W3), jnp.float32)   # unused
    lrsr_lv2 = jax.random.normal(ks[1], (N, C2, 2 * H3, 2 * W3), jnp.float32)   # unused
    lrsr_lv3 = jax.random.normal(ks[2], (N, C3, H3, W3), jnp.float32)
    refsr_lv3 = jax.random.normal(ks[3], (N, C3, Hr, Wr), jnp.float32)
    ref_lv1 = jax.random.normal(ks[4], (N, C1, 4 * Hr, 4 * Wr), jnp.float32)
    ref_lv2 = jax.random.normal(ks[5], (N, C2, 2 * Hr, 2 * Wr), jnp.float32)
    ref_lv3 = jax.random.normal(ks[6], (N, C3, Hr, Wr), jnp.float32)

    _, T3, T2, T1 = search_transfer_pallas(lrsr_lv1, lrsr_lv2, lrsr_lv3, refsr_lv3,
                                           ref_lv1, ref_lv2, ref_lv3,
                                           return_attention=False)
    jax.block_until_ready((T3, T2, T1))

    r3, r2, r1 = reference_forward(lrsr_lv3, refsr_lv3, ref_lv1, ref_lv2, ref_lv3)
    # Loose tolerance: the kernel feeds the MXU bf16 operands / bf16 P (f32 accumulation).
    np.testing.assert_allclose(np.asarray(T3), np.asarray(r3), rtol=1e-1, atol=1e-1)
    np.testing.assert_allclose(np.asarray(T2), np.asarray(r2), rtol=1e-1, atol=1e-1)
    np.testing.assert_allclose(np.asarray(T1), np.asarray(r1), rtol=1e-1, atol=1e-1)

    print("KERNEL_OK")
</pallas_src>

<mosaic_0001>
module attributes {stable_mosaic.version = 11 : i64} {
  func.func @_attention_kernel(%arg0: i32, %arg1: i32, %arg2: memref<1x640x128xbf16, #tpu.memory_space<vmem>>, %arg3: memref<1x64x640xbf16, #tpu.memory_space<vmem>>, %arg4: memref<1x64x128xbf16, #tpu.memory_space<vmem>>) attributes {dimension_semantics = [#tpu.dimension_semantics<parallel>, #tpu.dimension_semantics<parallel>], iteration_bounds = array<i64: 2, 1>, scalar_prefetch = 0 : i64, scratch_operands = 0 : i64, tpu.core_type = #tpu.core_type<tc>, window_params = [{transform_indices = @transform_0, window_bounds = array<i64: 1, 640, 128>}, {transform_indices = @transform_1, window_bounds = array<i64: 1, 64, 640>}, {transform_indices = @transform_2, window_bounds = array<i64: 1, 64, 128>}]} {
    %c0 = arith.constant 0 : index
    %c0_0 = arith.constant 0 : index
    %c0_1 = arith.constant 0 : index
    %0 = vector.load %arg3[%c0, %c0_0, %c0_1] : memref<1x64x640xbf16, #tpu.memory_space<vmem>>, vector<1x64x640xbf16>
    %1 = vector.shape_cast %0 : vector<1x64x640xbf16> to vector<64x640xbf16>
    %c0_2 = arith.constant 0 : index
    %c0_3 = arith.constant 0 : index
    %c0_4 = arith.constant 0 : index
    %2 = vector.load %arg2[%c0_2, %c0_3, %c0_4] : memref<1x640x128xbf16, #tpu.memory_space<vmem>>, vector<1x640x128xbf16>
    %3 = vector.shape_cast %2 : vector<1x640x128xbf16> to vector<640x128xbf16>
    %cst = arith.constant dense<0.000000e+00> : vector<64x128xf32>
    %4 = tpu.matmul %1, %3, %cst {dimension_numbers = #tpu.dot_dimension_numbers<[1], [0], [0], [1], [0, 0, 1, 1], [], []>} : vector<64x640xbf16>, vector<640x128xbf16>, vector<64x128xf32> -> vector<64x128xf32>
    %cst_5 = arith.constant 0.0416666679 : f32
    %5 = vector.broadcast %cst_5 : f32 to vector<64x128xf32>
    %6 = arith.mulf %4, %5 : vector<64x128xf32>
    %cst_6 = arith.constant dense<0xFF800000> : vector<128xf32>
    %7 = vector.multi_reduction <maximumf>, %6, %cst_6 [0] : vector<64x128xf32> to vector<128xf32>
    %8 = vector.shape_cast %7 : vector<128xf32> to vector<1x128xf32>
    %9 = vector.broadcast %8 : vector<1x128xf32> to vector<64x128xf32>
    %10 = arith.subf %6, %9 : vector<64x128xf32>
    %11 = math.exp %10 : vector<64x128xf32>
    %cst_7 = arith.constant dense<0.000000e+00> : vector<128xf32>
    %12 = vector.multi_reduction <add>, %11, %cst_7 [0] : vector<64x128xf32> to vector<128xf32>
    %13 = vector.shape_cast %12 : vector<128xf32> to vector<1x128xf32>
    %14 = vector.broadcast %13 : vector<1x128xf32> to vector<64x128xf32>
    %15 = arith.divf %11, %14 : vector<64x128xf32>
    %16 = arith.truncf %15 : vector<64x128xf32> to vector<64x128xbf16>
    %c0_8 = arith.constant 0 : index
    %c0_9 = arith.constant 0 : index
    %c0_10 = arith.constant 0 : index
    %17 = vector.load %arg4[%c0_8, %c0_9, %c0_10] : memref<1x64x128xbf16, #tpu.memory_space<vmem>>, vector<1x64x128xbf16>
    %18 = vector.shape_cast %17 : vector<1x64x128xbf16> to vector<64x128xbf16>
    %19 = vector.shape_cast %16 : vector<64x128xbf16> to vector<1x64x128xbf16>
    tpu.vector_store %arg4[%c0_8, %c0_9, %c0_10], %19 {strides = array<i32>} : memref<1x64x128xbf16, #tpu.memory_space<vmem>>, vector<1x64x128xbf16>,
    return
  }
  func.func @transform_0(%arg0: i32, %arg1: i32) -> (i32, i32, i32) {
    %c0_i32 = arith.constant 0 : i32
    %c0_i32_0 = arith.constant 0 : i32
    return %arg0, %c0_i32, %arg1 : i32, i32, i32
  }
  func.func @transform_1(%arg0: i32, %arg1: i32) -> (i32, i32, i32) {
    %c0_i32 = arith.constant 0 : i32
    %c0_i32_0 = arith.constant 0 : i32
    %c0_i32_1 = arith.constant 0 : i32
    return %arg0, %c0_i32, %c0_i32_0 : i32, i32, i32
  }
  func.func @transform_2(%arg0: i32, %arg1: i32) -> (i32, i32, i32) {
    %c0_i32 = arith.constant 0 : i32
    %c0_i32_0 = arith.constant 0 : i32
    return %arg0, %c0_i32, %arg1 : i32, i32, i32
  }
}

module attributes {stable_mosaic.version = 11 : i64} {
  func.func @_transfer_kernel(%arg0: i32, %arg1: i32, %arg2: i32, %arg3: memref<1x512x64xbf16, #tpu.memory_space<vmem>>, %arg4: memref<1x64x128xbf16, #tpu.memory_space<vmem>>, %arg5: memref<1x512x128xbf16, #tpu.memory_space<vmem>>) attributes {dimension_semantics = [#tpu.dimension_semantics<parallel>, #tpu.dimension_semantics<parallel>, #tpu.dimension_semantics<parallel>], iteration_bounds = array<i64: 2, 1, 8>, scalar_prefetch = 0 : i64, scratch_operands = 0 : i64, tpu.core_type = #tpu.core_type<tc>, window_params = [{transform_indices = @transform_0, window_bounds = array<i64: 1, 512, 64>}, {transform_indices = @transform_1, window_bounds = array<i64: 1, 64, 128>}, {transform_indices = @transform_2, window_bounds = array<i64: 1, 512, 128>}]} {
    %c0 = arith.constant 0 : index
    %c0_0 = arith.constant 0 : index
    %c0_1 = arith.constant 0 : index
    %0 = vector.load %arg3[%c0, %c0_0, %c0_1] : memref<1x512x64xbf16, #tpu.memory_space<vmem>>, vector<1x512x64xbf16>
    %1 = vector.shape_cast %0 : vector<1x512x64xbf16> to vector<512x64xbf16>
    %c0_2 = arith.constant 0 : index
    %c0_3 = arith.constant 0 : index
    %c0_4 = arith.constant 0 : index
    %2 = vector.load %arg4[%c0_2, %c0_3, %c0_4] : memref<1x64x128xbf16, #tpu.memory_space<vmem>>, vector<1x64x128xbf16>
    %3 = vector.shape_cast %2 : vector<1x64x128xbf16> to vector<64x128xbf16>
    %cst = arith.constant dense<0.000000e+00> : vector<512x128xf32>
    %4 = tpu.matmul %1, %3, %cst {dimension_numbers = #tpu.dot_dimension_numbers<[1], [0], [0], [1], [0, 0, 1, 1], [], []>} : vector<512x64xbf16>, vector<64x128xbf16>, vector<512x128xf32> -> vector<512x128xf32>
    %5 = arith.truncf %4 : vector<512x128xf32> to vector<512x128xbf16>
    %c0_5 = arith.constant 0 : index
    %c0_6 = arith.constant 0 : index
    %c0_7 = arith.constant 0 : index
    %6 = vector.load %arg5[%c0_5, %c0_6, %c0_7] : memref<1x512x128xbf16, #tpu.memory_space<vmem>>, vector<1x512x128xbf16>
    %7 = vector.shape_cast %6 : vector<1x512x128xbf16> to vector<512x128xbf16>
    %8 = vector.shape_cast %5 : vector<512x128xbf16> to vector<1x512x128xbf16>
    tpu.vector_store %arg5[%c0_5, %c0_6, %c0_7], %8 {strides = array<i32>} : memref<1x512x128xbf16, #tpu.memory_space<vmem>>, vector<1x512x128xbf16>,
    return
  }
  func.func @transform_0(%arg0: i32, %arg1: i32, %arg2: i32) -> (i32, i32, i32) {
    %c0_i32 = arith.constant 0 : i32
    %c0_i32_0 = arith.constant 0 : i32
    return %arg0, %arg2, %c0_i32 : i32, i32, i32
  }
  func.func @transform_1(%arg0: i32, %arg1: i32, %arg2: i32) -> (i32, i32, i32) {
    %c0_i32 = arith.constant 0 : i32
    %c0_i32_0 = arith.constant 0 : i32
    return %arg0, %c0_i32, %arg1 : i32, i32, i32
  }
  func.func @transform_2(%arg0: i32, %arg1: i32, %arg2: i32) -> (i32, i32, i32) {
    %c0_i32 = arith.constant 0 : i32
    return %arg0, %arg2, %arg1 : i32, i32, i32
  }
}

</mosaic_0001>

<llo_original>
// kernel: search_transfer_pallas.2
$region0: #{search_transfer_pallas.2}
  #allocation0 [shape = 'u32[]', space=smem, size = 0x4, offset = 0x4, fixed_abs, tag = 'smem constant byte address 0x4 - core index']
  #allocation1 [shape = 'u32[144,128]{1,0:T(1,128)}', space=vmem, size = 0x12000, scoped, tag = 'internal scratch']
  %s0 = inlined_call_operand.vmem [shape: bf16[2,640,128], index: 0, kind: input, shape index: {}]
  %s1 = inlined_call_operand.vmem [shape: bf16[2,64,640], index: 1, kind: input, shape index: {}]
  %s2 = inlined_call_operand.vmem [shape: bf16[2,64,128], index: 2, kind: output, shape index: {}]
  %s3 = sld [smem:[#allocation0]]
  $region41: #{search_transfer_pallas.2} parent=0
    _
  %s5 = ssub.s32 1, %s3
  %s6 = scalar_select 0, %s5, %s3
  loop: start=0, step=1, limit=4
  $region2: #{search_transfer_pallas.2} parent=0 // loop_pre_header
    _
  $region3: #{search_transfer_pallas.2} parent=0 // loop_header
    %s8 = sphi 0, %s12
    %p9 = scmp.ge.s32.totalorder %s8, 4
    %s15 = sphi 0, %s27
    %s16 = sphi 0, %s23
    %s17 = sphi 0, %s15
    %s18 = sphi 0, %s16
    %s19 = sphi 0, %s17
    %s20 = sphi 0, %s18
    %s32 = sphi 0, %s34
    %s35 = sphi 0, %s32
    %s36 = sphi 0, %s35
    %s52 = sphi 0, %s36
    %s58 = sphi 0, %s60
    %s61 = sphi 0, %s58
    %s62 = sphi 0, %s61
    %s78 = sphi 0, %s62
    %s86 = sphi 0, %s88
    %s89 = sphi 0, %s86
    %s90 = sphi 0, %s89
    %s106 = sphi 0, %s90
  $region4: #{search_transfer_pallas.2} parent=0 // loop_header_branch
    %11 = sbr.rel (%p9) target = $region8
  $region5: #{search_transfer_pallas.2} parent=0 // loop_body
    %s13 = ssub.s32 %s8, 1
    %s14 = ssub.s32 %s8, 2
    %s21 = sadd.s32 1, %s16
    %p22 = scmp.ge.s32.totalorder %s21, 1
    %s23 = scalar_select %p22, 0, %s21
    %s24 = sadd.s32 1, %s15
    %s25 = scalar_select %p22, %s24, %s15
    %p26 = scmp.ge.s32.totalorder %s25, 2
    %s27 = scalar_select %p26, 0, %s25
    %s28 = ssub.s32 %s15, %s27
    %s29 = ssub.s32 %s16, %s23
    %s30 = sor.u32 %s28, %s29
    %p31 = scmp.eq.s32.totalorder %s30, 0
    %s33 = sadd.s32 %s32, 1
    %s34 = scalar_select %p31, %s32, %s33
    %p37 = pneg %p31
    %p38 = scmp.eq.s32.totalorder %s8, 1
    %p39 = por %p37, %p38
    %p40 = scmp.ne.s32.totalorder %s32, %s35
    %p41 = scmp.eq.s32.totalorder %s8, 0
    %p42 = por %p40, %p41
    %p43 = scmp.ne.s32.totalorder %s32, %s35
    %p44 = scmp.eq.s32.totalorder %s13, 1
    %p45 = por %p43, %p44
    %p46 = scmp.ne.s32.totalorder %s35, %s36
    %p47 = scmp.eq.s32.totalorder %s13, 0
    %p48 = por %p46, %p47
    %p49 = scmp.ne.s32.totalorder %s35, %s36
    %p50 = scmp.eq.s32.totalorder %s14, 1
    %p51 = por %p49, %p50
    %p53 = scmp.ne.s32.totalorder %s36, %s52
    %p54 = scmp.eq.s32.totalorder %s14, 0
    %p55 = por %p53, %p54
    %s56 = ssub.s32 %s15, %s27
    %p57 = scmp.eq.s32.totalorder %s56, 0
    %s59 = sadd.s32 %s58, 1
    %s60 = scalar_select %p57, %s58, %s59
    %p63 = pneg %p57
    %p64 = scmp.eq.s32.totalorder %s8, 1
    %p65 = por %p63, %p64
    %p66 = scmp.ne.s32.totalorder %s58, %s61
    %p67 = scmp.eq.s32.totalorder %s8, 0
    %p68 = por %p66, %p67
    %p69 = scmp.ne.s32.totalorder %s58, %s61
    %p70 = scmp.eq.s32.totalorder %s13, 1
    %p71 = por %p69, %p70
    %p72 = scmp.ne.s32.totalorder %s61, %s62
    %p73 = scmp.eq.s32.totalorder %s13, 0
    %p74 = por %p72, %p73
    %p75 = scmp.ne.s32.totalorder %s61, %s62
    %p76 = scmp.eq.s32.totalorder %s14, 1
    %p77 = por %p75, %p76
    %p79 = scmp.ne.s32.totalorder %s62, %s78
    %p80 = scmp.eq.s32.totalorder %s14, 0
    %p81 = por %p79, %p80
    %s82 = ssub.s32 %s15, %s27
    %s83 = ssub.s32 %s16, %s23
    %s84 = sor.u32 %s82, %s83
    %p85 = scmp.eq.s32.totalorder %s84, 0
    %s87 = sadd.s32 %s86, 1
    %s88 = scalar_select %p85, %s86, %s87
    %p91 = pneg %p85
    %p92 = scmp.eq.s32.totalorder %s8, 1
    %p93 = por %p91, %p92
    %p94 = scmp.ne.s32.totalorder %s86, %s89
    %p95 = scmp.eq.s32.totalorder %s8, 0
    %p96 = por %p94, %p95
    %p97 = scmp.ne.s32.totalorder %s86, %s89
    %p98 = scmp.eq.s32.totalorder %s13, 1
    %p99 = por %p97, %p98
    %p100 = scmp.ne.s32.totalorder %s89, %s90
    %p101 = scmp.eq.s32.totalorder %s13, 0
    %p102 = por %p100, %p101
    %p103 = scmp.ne.s32.totalorder %s89, %s90
    %p104 = scmp.eq.s32.totalorder %s14, 1
    %p105 = por %p103, %p104
    %p107 = scmp.ne.s32.totalorder %s90, %s106
    %p108 = scmp.eq.s32.totalorder %s14, 0
    %p109 = por %p107, %p108
    %p110 = scmp.le.s32.totalorder 1, %s8
    %p111 = scmp.lt.s32.totalorder %s8, 3
    %p112 = pnand %p110, %p111
    %p113 = pneg %p112
    // Predicated region
    $region9: #{search_transfer_pallas.2} parent=5 // pred_check
      _
    $region10: #{search_transfer_pallas.2} parent=5 // pred_check_branch
      %115 = sbr.rel (%p112) target = $region12
    $region11: #{search_transfer_pallas.2} parent=5 // pred_region
      %s116 = ssub.s32 %s8, 1
    $region12: #{search_transfer_pallas.2} parent=5 // pred_fallthru
      _
    %p117 = scmp.lt.s32.totalorder %s8, 2
    // Predicated region
    $region13: #{search_transfer_pallas.2} parent=5 // pred_check
      %p118 = pneg %p117
    $region14: #{search_transfer_pallas.2} parent=5 // pred_check_branch
      %120 = sbr.rel (%p118) target = $region16
    $region15: #{search_transfer_pallas.2} parent=5 // pred_region
      // Predicated region
      $region17: #{search_transfer_pallas.2} parent=15 // pred_check
        %p121 = pneg %p42
      $region18: #{search_transfer_pallas.2} parent=15 // pred_check_branch
        %123 = sbr.rel (%p121) target = $region20
      $region19: #{search_transfer_pallas.2} parent=15 // pred_region
        %p124 = scmp.lt.s32.totalorder %s15, 1
        %s125 = scalar_select %p124, %s15, 1
        %p126 = scmp.lt.s32.totalorder %s16, 0
        %s127 = scalar_select %p126, %s16, 0
        %s128 = smul.addr %s125, 80
        %s129 = sadd.s32 %s127, %s128
        %s130 = smul.addr %s129, 4
        %s131 = scalar_lea.vmem %s0, %s130
      $region20: #{search_transfer_pallas.2} parent=15 // pred_fallthru
        _
      // Predicated region
      $region21: #{search_transfer_pallas.2} parent=15 // pred_check
        %p132 = pneg %p68
      $region22: #{search_transfer_pallas.2} parent=15 // pred_check_branch
        %134 = sbr.rel (%p132) target = $region24
      $region23: #{search_transfer_pallas.2} parent=15 // pred_region
        %p135 = scmp.lt.s32.totalorder %s15, 1
        %s136 = scalar_select %p135, %s15, 1
        %s137 = smul.addr %s136, 40
        %s138 = smul.addr %s137, 4
        %s139 = scalar_lea.vmem %s1, %s138
      $region24: #{search_transfer_pallas.2} parent=15 // pred_fallthru
        _
    $region16: #{search_transfer_pallas.2} parent=5 // pred_fallthru
      _
    %p140 = scmp.le.s32.totalorder 1, %s8
    %p141 = scmp.lt.s32.totalorder %s8, 3
    %p142 = pnand %p140, %p141
    %p143 = pneg %p142
    // Predicated region
    $region25: #{search_transfer_pallas.2} parent=5 // pred_check
      _
    $region26: #{search_transfer_pallas.2} parent=5 // pred_check_branch
      %145 = sbr.rel (%p142) target = $region28
    $region27: #{search_transfer_pallas.2} parent=5 // pred_region
      %s146 = ssub.s32 %s8, 1
      %p147 = scmp.lt.s32.totalorder %s17, 1
      %s148 = scalar_select %p147, %s17, 1
      %p149 = scmp.lt.s32.totalorder %s18, 0
      %s150 = scalar_select %p149, %s18, 0
      %s151 = smul.addr %s148, 80
      %s152 = sadd.s32 %s150, %s151
      %s153 = smul.addr %s152, 4
      %s154 = scalar_lea.vmem %s0, %s153
      %p155 = pneg %p48
      %p156 = pneg %p45
      %p157 = scmp.lt.s32.totalorder %s17, 1
      %s158 = scalar_select %p157, %s17, 1
      %s159 = smul.addr %s158, 40
      %s160 = smul.addr %s159, 4
      %s161 = scalar_lea.vmem %s1, %s160
      %p162 = pneg %p74
      %p163 = pneg %p71
      %p164 = pneg %p102
      %p165 = pneg %p99
      %p166 = scmp.lt.s32.totalorder %s17, 1
      %s167 = scalar_select %p166, %s17, 1
      %p168 = scmp.lt.s32.totalorder %s18, 0
      %s169 = scalar_select %p168, %s18, 0
      %s170 = smul.addr %s167, 8
      %s171 = sadd.s32 %s169, %s170
      %s172 = smul.addr %s171, 4
      %s173 = scalar_lea.vmem %s2, %s172
      %p174 = scmp.lt.s32.totalorder %s17, 1
      %s175 = scalar_select %p174, %s17, 1
      %p176 = scmp.lt.s32.totalorder %s18, 0
      %s177 = scalar_select %p176, %s18, 0
      %s178 = smul.addr %s175, 80
      %s179 = sadd.s32 %s177, %s178
      %s180 = smul.addr %s179, 4
      %s181 = scalar_lea.vmem %s0, %s180
      %p182 = scmp.lt.s32.totalorder %s17, 1
      %s183 = scalar_select %p182, %s17, 1
      %s184 = smul.addr %s183, 40
      %s185 = smul.addr %s184, 4
      %s186 = scalar_lea.vmem %s1, %s185
      %p187 = scmp.lt.s32.totalorder %s17, 1
      %s188 = scalar_select %p187, %s17, 1
      %p189 = scmp.lt.s32.totalorder %s18, 0
      %s190 = scalar_select %p189, %s18, 0
      %s191 = smul.addr %s188, 8
      %s192 = sadd.s32 %s190, %s191
      %s193 = smul.addr %s192, 4
      %s194 = scalar_lea.vmem %s2, %s193
      %v196 = vld [vmem:[%s186] sm:$0xff]
      %v197 = vld [vmem:[%s186 + $0x8] sm:$0xff]
      %v198 = vld [vmem:[%s186 + $0x10] sm:$0xf]
      %v199 = vld [vmem:[%s186 + $0x14] sm:$0xff]
      %v200 = vld [vmem:[%s186 + $0x1c] sm:$0xff]
      %v201 = vld [vmem:[%s186 + $0x24] sm:$0xf]
      %v202 = vld [vmem:[%s186 + $0x28] sm:$0xff]
      %v203 = vld [vmem:[%s186 + $0x30] sm:$0xff]
      %v204 = vld [vmem:[%s186 + $0x38] sm:$0xf]
      %v205 = vld [vmem:[%s186 + $0x3c] sm:$0xff]
      %v206 = vld [vmem:[%s186 + $0x44] sm:$0xff]
      %v207 = vld [vmem:[%s186 + $0x4c] sm:$0xf]
      %v208 = vld [vmem:[%s186 + $0x50] sm:$0xff]
      %v209 = vld [vmem:[%s186 + $0x58] sm:$0xff]
      %v210 = vld [vmem:[%s186 + $0x60] sm:$0xf]
      %v211 = vld [vmem:[%s186 + $0x64] sm:$0xff]
      %v212 = vld [vmem:[%s186 + $0x6c] sm:$0xff]
      %v213 = vld [vmem:[%s186 + $0x74] sm:$0xf]
      %v214 = vld [vmem:[%s186 + $0x78] sm:$0xff]
      %v215 = vld [vmem:[%s186 + $0x80] sm:$0xff]
      %v216 = vld [vmem:[%s186 + $0x88] sm:$0xf]
      %v217 = vld [vmem:[%s186 + $0x8c] sm:$0xff]
      %v218 = vld [vmem:[%s186 + $0x94] sm:$0xff]
      %v219 = vld [vmem:[%s186 + $0x9c] sm:$0xf]
      %v220 = vld [vmem:[%s181] sm:$0xf]
      %v221 = vld [vmem:[%s181 + $0x4] sm:$0xf]
      %v222 = vld [vmem:[%s181 + $0x8] sm:$0xf]
      %v223 = vld [vmem:[%s181 + $0xc] sm:$0xf]
      %v224 = vld [vmem:[%s181 + $0x10] sm:$0xf]
      %v225 = vld [vmem:[%s181 + $0x14] sm:$0xf]
      %v226 = vld [vmem:[%s181 + $0x18] sm:$0xf]
      %v227 = vld [vmem:[%s181 + $0x1c] sm:$0xf]
      %v228 = vld [vmem:[%s181 + $0x20] sm:$0xf]
      %v229 = vld [vmem:[%s181 + $0x24] sm:$0xf]
      %v230 = vld [vmem:[%s181 + $0x28] sm:$0xf]
      %v231 = vld [vmem:[%s181 + $0x2c] sm:$0xf]
      %v232 = vld [vmem:[%s181 + $0x30] sm:$0xf]
      %v233 = vld [vmem:[%s181 + $0x34] sm:$0xf]
      %v234 = vld [vmem:[%s181 + $0x38] sm:$0xf]
      %v235 = vld [vmem:[%s181 + $0x3c] sm:$0xf]
      %v236 = vld [vmem:[%s181 + $0x40] sm:$0xf]
      %v237 = vld [vmem:[%s181 + $0x44] sm:$0xf]
      %v238 = vld [vmem:[%s181 + $0x48] sm:$0xf]
      %v239 = vld [vmem:[%s181 + $0x4c] sm:$0xf]
      %v240 = vld [vmem:[%s181 + $0x50] sm:$0xf]
      %v241 = vld [vmem:[%s181 + $0x54] sm:$0xf]
      %v242 = vld [vmem:[%s181 + $0x58] sm:$0xf]
      %v243 = vld [vmem:[%s181 + $0x5c] sm:$0xf]
      %v244 = vld [vmem:[%s181 + $0x60] sm:$0xf]
      %v245 = vld [vmem:[%s181 + $0x64] sm:$0xf]
      %v246 = vld [vmem:[%s181 + $0x68] sm:$0xf]
      %v247 = vld [vmem:[%s181 + $0x6c] sm:$0xf]
      %v248 = vld [vmem:[%s181 + $0x70] sm:$0xf]
      %v249 = vld [vmem:[%s181 + $0x74] sm:$0xf]
      %v250 = vld [vmem:[%s181 + $0x78] sm:$0xf]
      %v251 = vld [vmem:[%s181 + $0x7c] sm:$0xf]
      %v252 = vld [vmem:[%s181 + $0x80] sm:$0xf]
      %v253 = vld [vmem:[%s181 + $0x84] sm:$0xf]
      %v254 = vld [vmem:[%s181 + $0x88] sm:$0xf]
      %v255 = vld [vmem:[%s181 + $0x8c] sm:$0xf]
      %v256 = vld [vmem:[%s181 + $0x90] sm:$0xf]
      %v257 = vld [vmem:[%s181 + $0x94] sm:$0xf]
      %v258 = vld [vmem:[%s181 + $0x98] sm:$0xf]
      %v259 = vld [vmem:[%s181 + $0x9c] sm:$0xf]
      %v260 = vld [vmem:[%s181 + $0xa0] sm:$0xf]
      %v261 = vld [vmem:[%s181 + $0xa4] sm:$0xf]
      %v262 = vld [vmem:[%s181 + $0xa8] sm:$0xf]
      %v263 = vld [vmem:[%s181 + $0xac] sm:$0xf]
      %v264 = vld [vmem:[%s181 + $0xb0] sm:$0xf]
      %v265 = vld [vmem:[%s181 + $0xb4] sm:$0xf]
      %v266 = vld [vmem:[%s181 + $0xb8] sm:$0xf]
      %v267 = vld [vmem:[%s181 + $0xbc] sm:$0xf]
      %v268 = vld [vmem:[%s181 + $0xc0] sm:$0xf]
      %v269 = vld [vmem:[%s181 + $0xc4] sm:$0xf]
      %v270 = vld [vmem:[%s181 + $0xc8] sm:$0xf]
      %v271 = vld [vmem:[%s181 + $0xcc] sm:$0xf]
      %v272 = vld [vmem:[%s181 + $0xd0] sm:$0xf]
      %v273 = vld [vmem:[%s181 + $0xd4] sm:$0xf]
      %v274 = vld [vmem:[%s181 + $0xd8] sm:$0xf]
      %v275 = vld [vmem:[%s181 + $0xdc] sm:$0xf]
      %v276 = vld [vmem:[%s181 + $0xe0] sm:$0xf]
      %v277 = vld [vmem:[%s181 + $0xe4] sm:$0xf]
      %v278 = vld [vmem:[%s181 + $0xe8] sm:$0xf]
      %v279 = vld [vmem:[%s181 + $0xec] sm:$0xf]
      %v280 = vld [vmem:[%s181 + $0xf0] sm:$0xf]
      %v281 = vld [vmem:[%s181 + $0xf4] sm:$0xf]
      %v282 = vld [vmem:[%s181 + $0xf8] sm:$0xf]
      %v283 = vld [vmem:[%s181 + $0xfc] sm:$0xf]
      %v284 = vld [vmem:[%s181 + $0x100] sm:$0xf]
      %v285 = vld [vmem:[%s181 + $0x104] sm:$0xf]
      %v286 = vld [vmem:[%s181 + $0x108] sm:$0xf]
      %v287 = vld [vmem:[%s181 + $0x10c] sm:$0xf]
      %v288 = vld [vmem:[%s181 + $0x110] sm:$0xf]
      %v289 = vld [vmem:[%s181 + $0x114] sm:$0xf]
      %v290 = vld [vmem:[%s181 + $0x118] sm:$0xf]
      %v291 = vld [vmem:[%s181 + $0x11c] sm:$0xf]
      %v292 = vld [vmem:[%s181 + $0x120] sm:$0xf]
      %v293 = vld [vmem:[%s181 + $0x124] sm:$0xf]
      %v294 = vld [vmem:[%s181 + $0x128] sm:$0xf]
      %v295 = vld [vmem:[%s181 + $0x12c] sm:$0xf]
      %v296 = vld [vmem:[%s181 + $0x130] sm:$0xf]
      %v297 = vld [vmem:[%s181 + $0x134] sm:$0xf]
      %v298 = vld [vmem:[%s181 + $0x138] sm:$0xf]
      %v299 = vld [vmem:[%s181 + $0x13c] sm:$0xf]
      %v324 = vunpack.c.l.b16 %v196
      %v325 = vunpack.c.h.b16 %v196
      %v326 = vunpack.c.l.b16 %v197
      %v327 = vunpack.c.h.b16 %v197
      %v328 = vunpack.c.l.b16 %v198
      %v329 = vunpack.c.l.b16 %v199
      %v330 = vunpack.c.h.b16 %v199
      %v331 = vunpack.c.l.b16 %v200
      %v332 = vunpack.c.h.b16 %v200
      %v333 = vunpack.c.l.b16 %v201
      %v334 = vunpack.c.l.b16 %v202
      %v335 = vunpack.c.h.b16 %v202
      %v336 = vunpack.c.l.b16 %v203
      %v337 = vunpack.c.h.b16 %v203
      %v338 = vunpack.c.l.b16 %v204
      %v339 = vunpack.c.l.b16 %v205
      %v340 = vunpack.c.h.b16 %v205
      %v341 = vunpack.c.l.b16 %v206
      %v342 = vunpack.c.h.b16 %v206
      %v343 = vunpack.c.l.b16 %v207
      %v344 = vunpack.c.l.b16 %v208
      %v345 = vunpack.c.h.b16 %v208
      %v346 = vunpack.c.l.b16 %v209
      %v347 = vunpack.c.h.b16 %v209
      %v348 = vunpack.c.l.b16 %v210
      %v349 = vunpack.c.l.b16 %v211
      %v350 = vunpack.c.h.b16 %v211
      %v351 = vunpack.c.l.b16 %v212
      %v352 = vunpack.c.h.b16 %v212
      %v353 = vunpack.c.l.b16 %v213
      %v354 = vunpack.c.l.b16 %v214
      %v355 = vunpack.c.h.b16 %v214
      %v356 = vunpack.c.l.b16 %v215
      %v357 = vunpack.c.h.b16 %v215
      %v358 = vunpack.c.l.b16 %v216
      %v359 = vunpack.c.l.b16 %v217
      %v360 = vunpack.c.h.b16 %v217
      %v361 = vunpack.c.l.b16 %v218
      %v362 = vunpack.c.h.b16 %v218
      %v363 = vunpack.c.l.b16 %v219
      %v364 = vpack.c.b16 %v329, %v324
      %v365 = vpack.c.b16 %v330, %v325
      %v366 = vpack.c.b16 %v331, %v326
      %v367 = vpack.c.b16 %v332, %v327
      %v368 = vpack.c.b16 %v333, %v328
      %v369 = vpack.c.b16 %v339, %v334
      %v370 = vpack.c.b16 %v340, %v335
      %v371 = vpack.c.b16 %v341, %v336
      %v372 = vpack.c.b16 %v342, %v337
      %v373 = vpack.c.b16 %v343, %v338
      %v374 = vpack.c.b16 %v349, %v344
      %v375 = vpack.c.b16 %v350, %v345
      %v376 = vpack.c.b16 %v351, %v346
      %v377 = vpack.c.b16 %v352, %v347
      %v378 = vpack.c.b16 %v353, %v348
      %v379 = vpack.c.b16 %v359, %v354
      %v380 = vpack.c.b16 %v360, %v355
      %v381 = vpack.c.b16 %v361, %v356
      %v382 = vpack.c.b16 %v362, %v357
      %v383 = vpack.c.b16 %v363, %v358
      %v484 = vunpack.c.l.b16 %v220
      %v485 = vunpack.c.l.b16 %v221
      %v486 = vunpack.c.l.b16 %v222
      %v487 = vunpack.c.l.b16 %v223
      %v488 = vunpack.c.l.b16 %v224
      %v489 = vunpack.c.l.b16 %v225
      %v490 = vunpack.c.l.b16 %v226
      %v491 = vunpack.c.l.b16 %v227
      %v492 = vunpack.c.l.b16 %v228
      %v493 = vunpack.c.l.b16 %v229
      %v494 = vunpack.c.l.b16 %v230
      %v495 = vunpack.c.l.b16 %v231
      %v496 = vunpack.c.l.b16 %v232
      %v497 = vunpack.c.l.b16 %v233
      %v498 = vunpack.c.l.b16 %v234
      %v499 = vunpack.c.l.b16 %v235
      %v500 = vunpack.c.l.b16 %v236
      %v501 = vunpack.c.l.b16 %v237
      %v502 = vunpack.c.l.b16 %v238
      %v503 = vunpack.c.l.b16 %v239
      %v504 = vunpack.c.l.b16 %v240
      %v505 = vunpack.c.l.b16 %v241
      %v506 = vunpack.c.l.b16 %v242
      %v507 = vunpack.c.l.b16 %v243
      %v508 = vunpack.c.l.b16 %v244
      %v509 = vunpack.c.l.b16 %v245
      %v510 = vunpack.c.l.b16 %v246
      %v511 = vunpack.c.l.b16 %v247
      %v512 = vunpack.c.l.b16 %v248
      %v513 = vunpack.c.l.b16 %v249
      %v514 = vunpack.c.l.b16 %v250
      %v515 = vunpack.c.l.b16 %v251
      %v516 = vunpack.c.l.b16 %v252
      %v517 = vunpack.c.l.b16 %v253
      %v518 = vunpack.c.l.b16 %v254
      %v519 = vunpack.c.l.b16 %v255
      %v520 = vunpack.c.l.b16 %v256
      %v521 = vunpack.c.l.b16 %v257
      %v522 = vunpack.c.l.b16 %v258
      %v523 = vunpack.c.l.b16 %v259
      %v524 = vunpack.c.l.b16 %v260
      %v525 = vunpack.c.l.b16 %v261
      %v526 = vunpack.c.l.b16 %v262
      %v527 = vunpack.c.l.b16 %v263
      %v528 = vunpack.c.l.b16 %v264
      %v529 = vunpack.c.l.b16 %v265
      %v530 = vunpack.c.l.b16 %v266
      %v531 = vunpack.c.l.b16 %v267
      %v532 = vunpack.c.l.b16 %v268
      %v533 = vunpack.c.l.b16 %v269
      %v534 = vunpack.c.l.b16 %v270
      %v535 = vunpack.c.l.b16 %v271
      %v536 = vunpack.c.l.b16 %v272
      %v537 = vunpack.c.l.b16 %v273
      %v538 = vunpack.c.l.b16 %v274
      %v539 = vunpack.c.l.b16 %v275
      %v540 = vunpack.c.l.b16 %v276
      %v541 = vunpack.c.l.b16 %v277
      %v542 = vunpack.c.l.b16 %v278
      %v543 = vunpack.c.l.b16 %v279
      %v544 = vunpack.c.l.b16 %v280
      %v545 = vunpack.c.l.b16 %v281
      %v546 = vunpack.c.l.b16 %v282
      %v547 = vunpack.c.l.b16 %v283
      %v548 = vunpack.c.l.b16 %v284
      %v549 = vunpack.c.l.b16 %v285
      %v550 = vunpack.c.l.b16 %v286
      %v551 = vunpack.c.l.b16 %v287
      %v552 = vunpack.c.l.b16 %v288
      %v553 = vunpack.c.l.b16 %v289
      %v554 = vunpack.c.l.b16 %v290
      %v555 = vunpack.c.l.b16 %v291
      %v556 = vunpack.c.l.b16 %v292
      %v557 = vunpack.c.l.b16 %v293
      %v558 = vunpack.c.l.b16 %v294
      %v559 = vunpack.c.l.b16 %v295
      %v560 = vunpack.c.l.b16 %v296
      %v561 = vunpack.c.l.b16 %v297
      %v562 = vunpack.c.l.b16 %v298
      %v563 = vunpack.c.l.b16 %v299
      %v564 = vpack.c.b16 %v485, %v484
      %v565 = vpack.c.b16 %v487, %v486
      %v566 = vpack.c.b16 %v489, %v488
      %v567 = vpack.c.b16 %v491, %v490
      %v568 = vpack.c.b16 %v493, %v492
      %v569 = vpack.c.b16 %v495, %v494
      %v570 = vpack.c.b16 %v497, %v496
      %v571 = vpack.c.b16 %v499, %v498
      %v572 = vpack.c.b16 %v501, %v500
      %v573 = vpack.c.b16 %v503, %v502
      %v574 = vpack.c.b16 %v505, %v504
      %v575 = vpack.c.b16 %v507, %v506
      %v576 = vpack.c.b16 %v509, %v508
      %v577 = vpack.c.b16 %v511, %v510
      %v578 = vpack.c.b16 %v513, %v512
      %v579 = vpack.c.b16 %v515, %v514
      %v580 = vpack.c.b16 %v517, %v516
      %v581 = vpack.c.b16 %v519, %v518
      %v582 = vpack.c.b16 %v521, %v520
      %v583 = vpack.c.b16 %v523, %v522
      %v584 = vpack.c.b16 %v525, %v524
      %v585 = vpack.c.b16 %v527, %v526
      %v586 = vpack.c.b16 %v529, %v528
      %v587 = vpack.c.b16 %v531, %v530
      %v588 = vpack.c.b16 %v533, %v532
      %v589 = vpack.c.b16 %v535, %v534
      %v590 = vpack.c.b16 %v537, %v536
      %v591 = vpack.c.b16 %v539, %v538
      %v592 = vpack.c.b16 %v541, %v540
      %v593 = vpack.c.b16 %v543, %v542
      %v594 = vpack.c.b16 %v545, %v544
      %v595 = vpack.c.b16 %v547, %v546
      %v596 = vpack.c.b16 %v549, %v548
      %v597 = vpack.c.b16 %v551, %v550
      %v598 = vpack.c.b16 %v553, %v552
      %v599 = vpack.c.b16 %v555, %v554
      %v600 = vpack.c.b16 %v557, %v556
      %v601 = vpack.c.b16 %v559, %v558
      %v602 = vpack.c.b16 %v561, %v560
      %v603 = vpack.c.b16 %v563, %v562
      %644 = vmatprep.subr.bf16.mxu0 0
      %645 = vmatpush1.bf16.msra.mxu0 %v564
      %646 = vmatprep.subr.bf16.mxu0 0
      %647 = vmatpush1.bf16.msra.mxu0 %v565
      %648 = vmatprep.subr.bf16.mxu0 0
      %649 = vmatpush1.bf16.msra.mxu0 %v566
      %650 = vmatprep.subr.bf16.mxu0 0
      %651 = vmatpush1.bf16.msra.mxu0 %v567
      %652 = vmatprep.subr.bf16.mxu0 0
      %653 = vmatpush1.bf16.msra.mxu0 %v568
      %654 = vmatprep.subr.bf16.mxu0 0
      %655 = vmatpush1.bf16.msra.mxu0 %v569
      %656 = vmatprep.subr.bf16.mxu0 0
      %657 = vmatpush1.bf16.msra.mxu0 %v570
      %658 = vmatprep.subr.bf16.mxu0 0
      %659 = vmatpush1.bf16.msra.mxu0 %v571
      %660 = vmatprep.subr.bf16.mxu0 0
      %661 = vmatpush1.bf16.msra.mxu0 %v572
      %662 = vmatprep.subr.bf16.mxu0 0
      %663 = vmatpush1.bf16.msra.mxu0 %v573
      %664 = vmatprep.subr.bf16.mxu0 0
      %665 = vmatpush1.bf16.msra.mxu0 %v574
      %666 = vmatprep.subr.bf16.mxu0 0
      %667 = vmatpush1.bf16.msra.mxu0 %v575
      %668 = vmatprep.subr.bf16.mxu0 0
      %669 = vmatpush1.bf16.msra.mxu0 %v576
      %670 = vmatprep.subr.bf16.mxu0 0
      %671 = vmatpush1.bf16.msra.mxu0 %v577
      %672 = vmatprep.subr.bf16.mxu0 0
      %673 = vmatpush1.bf16.msra.mxu0 %v578
      %674 = vmatprep.subr.bf16.mxu0 0
      %675 = vmatpush1.bf16.msra.mxu0 %v579
      %676 = vmatprep.mubr.bf16.mxu0 %v365
      %677 = vmatmul.mubr.bf16.gmra.mrb[0].mxu0 %v364
      %v678 = vpop.f32.mrb[0].mxu0
      %v679 = vadd.f32 0.0, %v678
      %v680 = vpop.f32.mrb[0].mxu0
      %v681 = vpop.f32.mrb[0].mxu0
      %v682 = vadd.f32 0.0, %v681
      %v683 = vpop.f32.mrb[0].mxu0
      %684 = vmatprep.mubr.bf16.mxu0 %v370
      %685 = vmatmul.mubr.bf16.gmra.mrb[0].mxu0 %v369
      %v686 = vpop.f32.mrb[0].mxu0
      %v687 = vadd.f32 0.0, %v686
      %v688 = vpop.f32.mrb[0].mxu0
      %v689 = vpop.f32.mrb[0].mxu0
      %v690 = vadd.f32 0.0, %v689
      %v691 = vpop.f32.mrb[0].mxu0
      %692 = vmatprep.mubr.bf16.mxu0 %v375
      %693 = vmatmul.mubr.bf16.gmra.mrb[0].mxu0 %v374
      %v694 = vpop.f32.mrb[0].mxu0
      %v695 = vadd.f32 0.0, %v694
      %v696 = vpop.f32.mrb[0].mxu0
      %v697 = vpop.f32.mrb[0].mxu0
      %v698 = vadd.f32 0.0, %v697
      %v699 = vpop.f32.mrb[0].mxu0
      %700 = vmatprep.mubr.bf16.mxu0 %v380
      %701 = vmatmul.mubr.bf16.gmra.mrb[0].mxu0 %v379
      %v702 = vpop.f32.mrb[0].mxu0
      %v703 = vadd.f32 0.0, %v702
      %v704 = vpop.f32.mrb[0].mxu0
      %v705 = vpop.f32.mrb[0].mxu0
      %v706 = vadd.f32 0.0, %v705
      %v707 = vpop.f32.mrb[0].mxu0
      %708 = vdwg.mxu0
      %709 = vmatprep.subr.bf16.mxu0 0
      %710 = vmatpush1.bf16.msra.mxu0 %v580
      %711 = vmatprep.subr.bf16.mxu0 0
      %712 = vmatpush1.bf16.msra.mxu0 %v581
      %713 = vmatprep.subr.bf16.mxu0 0
      %714 = vmatpush1.bf16.msra.mxu0 %v582
      %715 = vmatprep.subr.bf16.mxu0 0
      %716 = vmatpush1.bf16.msra.mxu0 %v583
      %717 = vmatprep.subr.bf16.mxu0 0
      %718 = vmatpush1.bf16.msra.mxu0 %v584
      %719 = vmatprep.subr.bf16.mxu0 0
      %720 = vmatpush1.bf16.msra.mxu0 %v585
      %721 = vmatprep.subr.bf16.mxu0 0
      %722 = vmatpush1.bf16.msra.mxu0 %v586
      %723 = vmatprep.subr.bf16.mxu0 0
      %724 = vmatpush1.bf16.msra.mxu0 %v587
      %725 = vmatprep.subr.bf16.mxu0 0
      %726 = vmatpush1.bf16.msra.mxu0 %v588
      %727 = vmatprep.subr.bf16.mxu0 0
      %728 = vmatpush1.bf16.msra.mxu0 %v589
      %729 = vmatprep.subr.bf16.mxu0 0
      %730 = vmatpush1.bf16.msra.mxu0 %v590
      %731 = vmatprep.subr.bf16.mxu0 0
      %732 = vmatpush1.bf16.msra.mxu0 %v591
      %733 = vmatprep.subr.bf16.mxu0 0
      %734 = vmatpush1.bf16.msra.mxu0 %v592
      %735 = vmatprep.subr.bf16.mxu0 0
      %736 = vmatpush1.bf16.msra.mxu0 %v593
      %737 = vmatprep.subr.bf16.mxu0 0
      %738 = vmatpush1.bf16.msra.mxu0 %v594
      %739 = vmatprep.subr.bf16.mxu0 0
      %740 = vmatpush1.bf16.msra.mxu0 %v595
      %741 = vmatprep.mubr.bf16.mxu0 %v367
      %742 = vmatmul.mubr.bf16.gmra.mrb[0].mxu0 %v366
      %v743 = vpop.f32.mrb[0].mxu0
      %v744 = vadd.f32 %v679, %v743
      %v745 = vpop.f32.mrb[0].mxu0
      %v746 = vpop.f32.mrb[0].mxu0
      %v747 = vadd.f32 %v682, %v746
      %v748 = vpop.f32.mrb[0].mxu0
      %749 = vmatprep.mubr.bf16.mxu0 %v372
      %750 = vmatmul.mubr.bf16.gmra.mrb[0].mxu0 %v371
      %v751 = vpop.f32.mrb[0].mxu0
      %v752 = vadd.f32 %v687, %v751
      %v753 = vpop.f32.mrb[0].mxu0
      %v754 = vpop.f32.mrb[0].mxu0
      %v755 = vadd.f32 %v690, %v754
      %v756 = vpop.f32.mrb[0].mxu0
      %757 = vmatprep.mubr.bf16.mxu0 %v377
      %758 = vmatmul.mubr.bf16.gmra.mrb[0].mxu0 %v376
      %v759 = vpop.f32.mrb[0].mxu0
      %v760 = vadd.f32 %v695, %v759
      %v761 = vpop.f32.mrb[0].mxu0
      %v762 = vpop.f32.mrb[0].mxu0
      %v763 = vadd.f32 %v698, %v762
      %v764 = vpop.f32.mrb[0].mxu0
      %765 = vmatprep.mubr.bf16.mxu0 %v382
      %766 = vmatmul.mubr.bf16.gmra.mrb[0].mxu0 %v381
      %v767 = vpop.f32.mrb[0].mxu0
      %v768 = vadd.f32 %v703, %v767
      %v769 = vpop.f32.mrb[0].mxu0
      %v770 = vpop.f32.mrb[0].mxu0
      %v771 = vadd.f32 %v706, %v770
      %v772 = vpop.f32.mrb[0].mxu0
      %773 = vdwg.mxu0
      %774 = vmatprep.subr.bf16.mxu0 0
      %775 = vmatpush1.bf16.msra.mxu0 %v596
      %776 = vmatprep.subr.bf16.mxu0 0
      %777 = vmatpush1.bf16.msra.mxu0 %v597
      %778 = vmatprep.subr.bf16.mxu0 0
      %779 = vmatpush1.bf16.msra.mxu0 %v598
      %780 = vmatprep.subr.bf16.mxu0 0
      %781 = vmatpush1.bf16.msra.mxu0 %v599
      %782 = vmatprep.subr.bf16.mxu0 0
      %783 = vmatpush1.bf16.msra.mxu0 %v600
      %784 = vmatprep.subr.bf16.mxu0 0
      %785 = vmatpush1.bf16.msra.mxu0 %v601
      %786 = vmatprep.subr.bf16.mxu0 0
      %787 = vmatpush1.bf16.msra.mxu0 %v602
      %788 = vmatprep.subr.bf16.mxu0 0
      %789 = vmatpush1.bf16.msra.mxu0 %v603
      %790 = vmatprep.subr.bf16.mxu0 0
      %791 = vmatpush1.bf16.msra.mxu0 0
      %792 = vmatprep.subr.bf16.mxu0 0
      %793 = vmatpush1.bf16.msra.mxu0 0
      %794 = vmatprep.subr.bf16.mxu0 0
      %795 = vmatpush1.bf16.msra.mxu0 0
      %796 = vmatprep.subr.bf16.mxu0 0
      %797 = vmatpush1.bf16.msra.mxu0 0
      %798 = vmatprep.subr.bf16.mxu0 0
      %799 = vmatpush1.bf16.msra.mxu0 0
      %800 = vmatprep.subr.bf16.mxu0 0
      %801 = vmatpush1.bf16.msra.mxu0 0
      %802 = vmatprep.subr.bf16.mxu0 0
      %803 = vmatpush1.bf16.msra.mxu0 0
      %804 = vmatprep.subr.bf16.mxu0 0
      %805 = vmatpush1.bf16.msra.mxu0 0
      %806 = vmatprep.mubr.bf16.mxu0 0
      %807 = vmatmul.mubr.bf16.gmra.mrb[0].mxu0 %v368
      %v808 = vpop.f32.mrb[0].mxu0
      %v809 = vadd.f32 %v744, %v808
      %v810 = vpop.f32.mrb[0].mxu0
      %v811 = vpop.f32.mrb[0].mxu0
      %v812 = vadd.f32 %v747, %v811
      %v813 = vpop.f32.mrb[0].mxu0
      %814 = vmatprep.mubr.bf16.mxu0 0
      %815 = vmatmul.mubr.bf16.gmra.mrb[0].mxu0 %v373
      %v816 = vpop.f32.mrb[0].mxu0
      %v817 = vadd.f32 %v752, %v816
      %v818 = vpop.f32.mrb[0].mxu0
      %v819 = vpop.f32.mrb[0].mxu0
      %v820 = vadd.f32 %v755, %v819
      %v821 = vpop.f32.mrb[0].mxu0
      %822 = vmatprep.mubr.bf16.mxu0 0
      %823 = vmatmul.mubr.bf16.gmra.mrb[0].mxu0 %v378
      %v824 = vpop.f32.mrb[0].mxu0
      %v825 = vadd.f32 %v760, %v824
      %v826 = vpop.f32.mrb[0].mxu0
      %v827 = vpop.f32.mrb[0].mxu0
      %v828 = vadd.f32 %v763, %v827
      %v829 = vpop.f32.mrb[0].mxu0
      %830 = vmatprep.mubr.bf16.mxu0 0
      %831 = vmatmul.mubr.bf16.gmra.mrb[0].mxu0 %v383
      %v832 = vpop.f32.mrb[0].mxu0
      %v833 = vadd.f32 %v768, %v832
      %v834 = vpop.f32.mrb[0].mxu0
      %v835 = vpop.f32.mrb[0].mxu0
      %v836 = vadd.f32 %v771, %v835
      %v837 = vpop.f32.mrb[0].mxu0
      %838 = vdwg.mxu0
      %v839 = vmul.f32 %v809, 0.041666668
      %v840 = vmul.f32 %v812, 0.041666668
      %v841 = vmul.f32 %v817, 0.041666668
      %v842 = vmul.f32 %v820, 0.041666668
      %v843 = vmul.f32 %v825, 0.041666668
      %v844 = vmul.f32 %v828, 0.041666668
      %v845 = vmul.f32 %v833, 0.041666668
      %v846 = vmul.f32 %v836, 0.041666668
      %v847 = vmax.f32 %v839, %v843
      %v848 = vmax.f32 %v840, %v844
      %v849 = vmax.f32 %v841, %v845
      %v850 = vmax.f32 %v842, %v846
      %v851 = vmax.f32 %v847, %v848
      %v852 = vmax.f32 %v849, %v850
      %v853 = vmax.f32 %v851, %v852
      %v854 = vrot.slane %v853, 4
      %v855 = vmax.f32 %v853, %v854
      %v856 = vrot.slane %v855, 2
      %v857 = vmax.f32 %v855, %v856
      %v858 = vrot.slane %v857, 1
      %v859 = vmax.f32 %v857, %v858
      %v860 = vsub.f32 %v839, %v859
      %v861 = vsub.f32 %v840, %v859
      %v862 = vsub.f32 %v841, %v859
      %v863 = vsub.f32 %v842, %v859
      %v864 = vsub.f32 %v843, %v859
      %v865 = vsub.f32 %v844, %v859
      %v866 = vsub.f32 %v845, %v859
      %v867 = vsub.f32 %v846, %v859
      %v868 = vmul.f32 %v860, 1.442695
      %v869 = vpow.pop %v868
      %v870 = vmul.f32 %v861, 1.442695
      %v871 = vpow.pop %v870
      %v872 = vmul.f32 %v862, 1.442695
      %v873 = vpow.pop %v872
      %v874 = vmul.f32 %v863, 1.442695
      %v875 = vpow.pop %v874
      %v876 = vmul.f32 %v864, 1.442695
      %v877 = vpow.pop %v876
      %v878 = vmul.f32 %v865, 1.442695
      %v879 = vpow.pop %v878
      %v880 = vmul.f32 %v866, 1.442695
      %v881 = vpow.pop %v880
      %v882 = vmul.f32 %v867, 1.442695
      %v883 = vpow.pop %v882
      %v884 = vadd.f32 %v869, %v871
      %v885 = vadd.f32 %v884, %v873
      %v886 = vadd.f32 %v885, %v875
      %v887 = vadd.f32 %v886, %v877
      %v888 = vadd.f32 %v887, %v879
      %v889 = vadd.f32 %v888, %v881
      %v890 = vadd.f32 %v889, %v883
      %v891 = vrot.slane %v890, 4
      %v892 = vadd.f32 %v890, %v891
      %v893 = vrot.slane %v892, 2
      %v894 = vadd.f32 %v892, %v893
      %v895 = vrot.slane %v894, 1
      %v896 = vadd.f32 %v894, %v895
      %v897 = vrcp.pop %v896
      %v898 = vmul.f32 %v869, %v897
      %v899 = vmul.f32 %v871, %v897
      %v900 = vmul.f32 %v873, %v897
      %v901 = vmul.f32 %v875, %v897
      %v902 = vmul.f32 %v877, %v897
      %v903 = vmul.f32 %v879, %v897
      %v904 = vmul.f32 %v881, %v897
      %v905 = vmul.f32 %v883, %v897
      %v906 = vpack.c.bf16 %v899, %v898
      %v907 = vpack.c.bf16 %v901, %v900
      %v908 = vpack.c.bf16 %v903, %v902
      %v909 = vpack.c.bf16 %v905, %v904
      %v914 = vunpack.c.l.b16 %v906
      %v915 = vunpack.c.h.b16 %v906
      %v916 = vunpack.c.l.b16 %v907
      %v917 = vunpack.c.h.b16 %v907
      %v918 = vunpack.c.l.b16 %v908
      %v919 = vunpack.c.h.b16 %v908
      %v920 = vunpack.c.l.b16 %v909
      %v921 = vunpack.c.h.b16 %v909
      %v922 = vpack.c.b16 %v914, %v914
      %v923 = vpack.c.b16 %v915, %v915
      %v924 = vpack.c.b16 %v916, %v916
      %v925 = vpack.c.b16 %v917, %v917
      %v926 = vpack.c.b16 %v918, %v918
      %v927 = vpack.c.b16 %v919, %v919
      %v928 = vpack.c.b16 %v920, %v920
      %v929 = vpack.c.b16 %v921, %v921
      %938 = vst [vmem:[%s194] sm:$0xf] %v922
      %939 = vst [vmem:[%s194 + $0x4] sm:$0xf] %v923
      %940 = vst [vmem:[%s194 + $0x8] sm:$0xf] %v924
      %941 = vst [vmem:[%s194 + $0xc] sm:$0xf] %v925
      %942 = vst [vmem:[%s194 + $0x10] sm:$0xf] %v926
      %943 = vst [vmem:[%s194 + $0x14] sm:$0xf] %v927
      %944 = vst [vmem:[%s194 + $0x18] sm:$0xf] %v928
      %945 = vst [vmem:[%s194 + $0x1c] sm:$0xf] %v929
      %p946 = scmp.lt.s32.totalorder %s17, 1
      %s947 = scalar_select %p946, %s17, 1
      %p948 = scmp.lt.s32.totalorder %s18, 0
      %s949 = scalar_select %p948, %s18, 0
      %s950 = smul.addr %s947, 8
      %s951 = sadd.s32 %s949, %s950
      %s952 = smul.addr %s951, 4
      %s953 = scalar_lea.vmem %s2, %s952
      // Predicated region
      $region29: #{search_transfer_pallas.2} parent=27 // pred_check
        %p954 = pneg %p99
      $region30: #{search_transfer_pallas.2} parent=27 // pred_check_branch
        %956 = sbr.rel (%p954) target = $region32
      $region31: #{search_transfer_pallas.2} parent=27 // pred_region
        _
      $region32: #{search_transfer_pallas.2} parent=27 // pred_fallthru
        _
    $region28: #{search_transfer_pallas.2} parent=5 // pred_fallthru
      _
    %p957 = scmp.le.s32.totalorder 2, %s8
    // Predicated region
    $region33: #{search_transfer_pallas.2} parent=5 // pred_check
      %p958 = pneg %p957
    $region34: #{search_transfer_pallas.2} parent=5 // pred_check_branch
      %960 = sbr.rel (%p958) target = $region36
    $region35: #{search_transfer_pallas.2} parent=5 // pred_region
      %s961 = ssub.s32 %s8, 2
      // Predicated region
      $region37: #{search_transfer_pallas.2} parent=35 // pred_check
        %p962 = pneg %p105
      $region38: #{search_transfer_pallas.2} parent=35 // pred_check_branch
        %964 = sbr.rel (%p962) target = $region40
      $region39: #{search_transfer_pallas.2} parent=35 // pred_region
        %p965 = scmp.lt.s32.totalorder %s19, 1
        %s966 = scalar_select %p965, %s19, 1
        %p967 = scmp.lt.s32.totalorder %s20, 0
        %s968 = scalar_select %p967, %s20, 0
        %s969 = smul.addr %s966, 8
        %s970 = sadd.s32 %s968, %s969
        %s971 = smul.addr %s970, 4
        %s972 = scalar_lea.vmem %s2, %s971
      $region40: #{search_transfer_pallas.2} parent=35 // pred_fallthru
        _
    $region36: #{search_transfer_pallas.2} parent=5 // pred_fallthru
      _
  $region6: #{search_transfer_pallas.2} parent=0 // loop_footer
    %s12 = sadd.s32 1, %s8
  $region7: #{search_transfer_pallas.2} parent=0 // loop_footer_branch
    %7 = sbr.rel target = $region3
  $region8: #{search_transfer_pallas.2} parent=0 // loop_exit
    _

// kernel: search_transfer_pallas.3
$region0: #{search_transfer_pallas.3}
  #allocation0 [shape = 'u32[]', space=smem, size = 0x4, offset = 0x4, fixed_abs, tag = 'smem constant byte address 0x4 - core index']
  #allocation1 [shape = 'u32[144,128]{1,0:T(1,128)}', space=vmem, size = 0x12000, scoped, tag = 'internal scratch']
  %s0 = inlined_call_operand.vmem [shape: bf16[2,4096,64], index: 0, kind: input, shape index: {}]
  %s1 = inlined_call_operand.vmem [shape: bf16[2,64,128], index: 1, kind: input, shape index: {}]
  %s2 = inlined_call_operand.vmem [shape: bf16[2,4096,128], index: 2, kind: output, shape index: {}]
  %s3 = sld [smem:[#allocation0]]
  $region41: #{search_transfer_pallas.3} parent=0
    _
  %s5 = ssub.s32 1, %s3
  %s6 = scalar_select 0, %s5, %s3
  loop: start=0, step=1, limit=18
  $region2: #{search_transfer_pallas.3} parent=0 // loop_pre_header
    _
  $region3: #{search_transfer_pallas.3} parent=0 // loop_header
    %s8 = sphi 0, %s12
    %p9 = scmp.ge.s32.totalorder %s8, 18
    %s15 = sphi 0, %s34
    %s16 = sphi 0, %s30
    %s17 = sphi 0, %s26
    %s18 = sphi 0, %s15
    %s19 = sphi 0, %s16
    %s20 = sphi 0, %s17
    %s21 = sphi 0, %s18
    %s22 = sphi 0, %s19
    %s23 = sphi 0, %s20
    %s39 = sphi 0, %s41
    %s42 = sphi 0, %s39
    %s43 = sphi 0, %s42
    %s59 = sphi 0, %s43
    %s67 = sphi 0, %s69
    %s70 = sphi 0, %s67
    %s71 = sphi 0, %s70
    %s87 = sphi 0, %s71
    %s97 = sphi 0, %s99
    %s100 = sphi 0, %s97
    %s101 = sphi 0, %s100
    %s117 = sphi 0, %s101
  $region4: #{search_transfer_pallas.3} parent=0 // loop_header_branch
    %11 = sbr.rel (%p9) target = $region8
  $region5: #{search_transfer_pallas.3} parent=0 // loop_body
    %s13 = ssub.s32 %s8, 1
    %s14 = ssub.s32 %s8, 2
    %s24 = sadd.s32 1, %s17
    %p25 = scmp.ge.s32.totalorder %s24, 8
    %s26 = scalar_select %p25, 0, %s24
    %s27 = sadd.s32 1, %s16
    %s28 = scalar_select %p25, %s27, %s16
    %p29 = scmp.ge.s32.totalorder %s28, 1
    %s30 = scalar_select %p29, 0, %s28
    %s31 = sadd.s32 1, %s15
    %s32 = scalar_select %p29, %s31, %s15
    %p33 = scmp.ge.s32.totalorder %s32, 2
    %s34 = scalar_select %p33, 0, %s32
    %s35 = ssub.s32 %s15, %s34
    %s36 = ssub.s32 %s17, %s26
    %s37 = sor.u32 %s35, %s36
    %p38 = scmp.eq.s32.totalorder %s37, 0
    %s40 = sadd.s32 %s39, 1
    %s41 = scalar_select %p38, %s39, %s40
    %p44 = pneg %p38
    %p45 = scmp.eq.s32.totalorder %s8, 15
    %p46 = por %p44, %p45
    %p47 = scmp.ne.s32.totalorder %s39, %s42
    %p48 = scmp.eq.s32.totalorder %s8, 0
    %p49 = por %p47, %p48
    %p50 = scmp.ne.s32.totalorder %s39, %s42
    %p51 = scmp.eq.s32.totalorder %s13, 15
    %p52 = por %p50, %p51
    %p53 = scmp.ne.s32.totalorder %s42, %s43
    %p54 = scmp.eq.s32.totalorder %s13, 0
    %p55 = por %p53, %p54
    %p56 = scmp.ne.s32.totalorder %s42, %s43
    %p57 = scmp.eq.s32.totalorder %s14, 15
    %p58 = por %p56, %p57
    %p60 = scmp.ne.s32.totalorder %s43, %s59
    %p61 = scmp.eq.s32.totalorder %s14, 0
    %p62 = por %p60, %p61
    %s63 = ssub.s32 %s15, %s34
    %s64 = ssub.s32 %s16, %s30
    %s65 = sor.u32 %s63, %s64
    %p66 = scmp.eq.s32.totalorder %s65, 0
    %s68 = sadd.s32 %s67, 1
    %s69 = scalar_select %p66, %s67, %s68
    %p72 = pneg %p66
    %p73 = scmp.eq.s32.totalorder %s8, 15
    %p74 = por %p72, %p73
    %p75 = scmp.ne.s32.totalorder %s67, %s70
    %p76 = scmp.eq.s32.totalorder %s8, 0
    %p77 = por %p75, %p76
    %p78 = scmp.ne.s32.totalorder %s67, %s70
    %p79 = scmp.eq.s32.totalorder %s13, 15
    %p80 = por %p78, %p79
    %p81 = scmp.ne.s32.totalorder %s70, %s71
    %p82 = scmp.eq.s32.totalorder %s13, 0
    %p83 = por %p81, %p82
    %p84 = scmp.ne.s32.totalorder %s70, %s71
    %p85 = scmp.eq.s32.totalorder %s14, 15
    %p86 = por %p84, %p85
    %p88 = scmp.ne.s32.totalorder %s71, %s87
    %p89 = scmp.eq.s32.totalorder %s14, 0
    %p90 = por %p88, %p89
    %s91 = ssub.s32 %s15, %s34
    %s92 = ssub.s32 %s17, %s26
    %s93 = sor.u32 %s91, %s92
    %s94 = ssub.s32 %s16, %s30
    %s95 = sor.u32 %s93, %s94
    %p96 = scmp.eq.s32.totalorder %s95, 0
    %s98 = sadd.s32 %s97, 1
    %s99 = scalar_select %p96, %s97, %s98
    %p102 = pneg %p96
    %p103 = scmp.eq.s32.totalorder %s8, 15
    %p104 = por %p102, %p103
    %p105 = scmp.ne.s32.totalorder %s97, %s100
    %p106 = scmp.eq.s32.totalorder %s8, 0
    %p107 = por %p105, %p106
    %p108 = scmp.ne.s32.totalorder %s97, %s100
    %p109 = scmp.eq.s32.totalorder %s13, 15
    %p110 = por %p108, %p109
    %p111 = scmp.ne.s32.totalorder %s100, %s101
    %p112 = scmp.eq.s32.totalorder %s13, 0
    %p113 = por %p111, %p112
    %p114 = scmp.ne.s32.totalorder %s100, %s101
    %p115 = scmp.eq.s32.totalorder %s14, 15
    %p116 = por %p114, %p115
    %p118 = scmp.ne.s32.totalorder %s101, %s117
    %p119 = scmp.eq.s32.totalorder %s14, 0
    %p120 = por %p118, %p119
    %p121 = scmp.le.s32.totalorder 1, %s8
    %p122 = scmp.lt.s32.totalorder %s8, 17
    %p123 = pnand %p121, %p122
    %p124 = pneg %p123
    // Predicated region
    $region9: #{search_transfer_pallas.3} parent=5 // pred_check
      _
    $region10: #{search_transfer_pallas.3} parent=5 // pred_check_branch
      %126 = sbr.rel (%p123) target = $region12
    $region11: #{search_transfer_pallas.3} parent=5 // pred_region
      %s127 = ssub.s32 %s8, 1
    $region12: #{search_transfer_pallas.3} parent=5 // pred_fallthru
      _
    %p128 = scmp.lt.s32.totalorder %s8, 16
    // Predicated region
    $region13: #{search_transfer_pallas.3} parent=5 // pred_check
      %p129 = pneg %p128
    $region14: #{search_transfer_pallas.3} parent=5 // pred_check_branch
      %131 = sbr.rel (%p129) target = $region16
    $region15: #{search_transfer_pallas.3} parent=5 // pred_region
      // Predicated region
      $region17: #{search_transfer_pallas.3} parent=15 // pred_check
        %p132 = pneg %p49
      $region18: #{search_transfer_pallas.3} parent=15 // pred_check_branch
        %134 = sbr.rel (%p132) target = $region20
      $region19: #{search_transfer_pallas.3} parent=15 // pred_region
        %s135 = smul.u32 64, %s17
        %p136 = scmp.lt.s32.totalorder %s15, 1
        %s137 = scalar_select %p136, %s15, 1
        %p138 = scmp.lt.s32.totalorder %s135, 511
        %s139 = scalar_select %p138, %s135, 511
        %s140 = smul.addr %s137, 512
        %s141 = sadd.s32 %s139, %s140
        %s142 = smul.addr %s141, 4
        %s143 = scalar_lea.vmem %s0, %s142
        %s144 = smul.u32 64, %s17
      $region20: #{search_transfer_pallas.3} parent=15 // pred_fallthru
        _
      // Predicated region
      $region21: #{search_transfer_pallas.3} parent=15 // pred_check
        %p145 = pneg %p77
      $region22: #{search_transfer_pallas.3} parent=15 // pred_check_branch
        %147 = sbr.rel (%p145) target = $region24
      $region23: #{search_transfer_pallas.3} parent=15 // pred_region
        %p148 = scmp.lt.s32.totalorder %s15, 1
        %s149 = scalar_select %p148, %s15, 1
        %p150 = scmp.lt.s32.totalorder %s16, 0
        %s151 = scalar_select %p150, %s16, 0
        %s152 = smul.addr %s149, 8
        %s153 = sadd.s32 %s151, %s152
        %s154 = smul.addr %s153, 4
        %s155 = scalar_lea.vmem %s1, %s154
      $region24: #{search_transfer_pallas.3} parent=15 // pred_fallthru
        _
    $region16: #{search_transfer_pallas.3} parent=5 // pred_fallthru
      _
    %p156 = scmp.le.s32.totalorder 1, %s8
    %p157 = scmp.lt.s32.totalorder %s8, 17
    %p158 = pnand %p156, %p157
    %p159 = pneg %p158
    // Predicated region
    $region25: #{search_transfer_pallas.3} parent=5 // pred_check
      _
    $region26: #{search_transfer_pallas.3} parent=5 // pred_check_branch
      %161 = sbr.rel (%p158) target = $region28
    $region27: #{search_transfer_pallas.3} parent=5 // pred_region
      %s162 = ssub.s32 %s8, 1
      %s163 = smul.u32 64, %s20
      %p164 = scmp.lt.s32.totalorder %s18, 1
      %s165 = scalar_select %p164, %s18, 1
      %p166 = scmp.lt.s32.totalorder %s163, 511
      %s167 = scalar_select %p166, %s163, 511
      %s168 = smul.addr %s165, 512
      %s169 = sadd.s32 %s167, %s168
      %s170 = smul.addr %s169, 4
      %s171 = scalar_lea.vmem %s0, %s170
      %p172 = pneg %p55
      %p173 = pneg %p52
      %p174 = scmp.lt.s32.totalorder %s18, 1
      %s175 = scalar_select %p174, %s18, 1
      %p176 = scmp.lt.s32.totalorder %s19, 0
      %s177 = scalar_select %p176, %s19, 0
      %s178 = smul.addr %s175, 8
      %s179 = sadd.s32 %s177, %s178
      %s180 = smul.addr %s179, 4
      %s181 = scalar_lea.vmem %s1, %s180
      %p182 = pneg %p83
      %p183 = pneg %p80
      %p184 = pneg %p113
      %p185 = pneg %p110
      %s186 = smul.u32 64, %s20
      %p187 = scmp.lt.s32.totalorder %s18, 1
      %s188 = scalar_select %p187, %s18, 1
      %p189 = scmp.lt.s32.totalorder %s186, 511
      %s190 = scalar_select %p189, %s186, 511
      %p191 = scmp.lt.s32.totalorder %s19, 0
      %s192 = scalar_select %p191, %s19, 0
      %s193 = sadd.s32 %s192, %s190
      %s194 = smul.addr %s188, 512
      %s195 = sadd.s32 %s193, %s194
      %s196 = smul.addr %s195, 4
      %s197 = scalar_lea.vmem %s2, %s196
      %s198 = smul.u32 64, %s20
      %p199 = scmp.lt.s32.totalorder %s18, 1
      %s200 = scalar_select %p199, %s18, 1
      %p201 = scmp.lt.s32.totalorder %s198, 511
      %s202 = scalar_select %p201, %s198, 511
      %s203 = smul.addr %s200, 512
      %s204 = sadd.s32 %s202, %s203
      %s205 = smul.addr %s204, 4
      %s206 = scalar_lea.vmem %s0, %s205
      %s207 = smul.u32 64, %s20
      %p208 = scmp.lt.s32.totalorder %s18, 1
      %s209 = scalar_select %p208, %s18, 1
      %p210 = scmp.lt.s32.totalorder %s19, 0
      %s211 = scalar_select %p210, %s19, 0
      %s212 = smul.addr %s209, 8
      %s213 = sadd.s32 %s211, %s212
      %s214 = smul.addr %s213, 4
      %s215 = scalar_lea.vmem %s1, %s214
      %s216 = smul.u32 64, %s20
      %p217 = scmp.lt.s32.totalorder %s18, 1
      %s218 = scalar_select %p217, %s18, 1
      %p219 = scmp.lt.s32.totalorder %s216, 511
      %s220 = scalar_select %p219, %s216, 511
      %p221 = scmp.lt.s32.totalorder %s19, 0
      %s222 = scalar_select %p221, %s19, 0
      %s223 = sadd.s32 %s222, %s220
      %s224 = smul.addr %s218, 512
      %s225 = sadd.s32 %s223, %s224
      %s226 = smul.addr %s225, 4
      %s227 = scalar_lea.vmem %s2, %s226
      %s228 = smul.u32 64, %s20
      %v230 = vld [vmem:[%s206] sm:$0xf]
      %v231 = vld [vmem:[%s206 + $0x4] sm:$0xf]
      %v232 = vld [vmem:[%s206 + $0x8] sm:$0xf]
      %v233 = vld [vmem:[%s206 + $0xc] sm:$0xf]
      %v234 = vld [vmem:[%s206 + $0x10] sm:$0xf]
      %v235 = vld [vmem:[%s206 + $0x14] sm:$0xf]
      %v236 = vld [vmem:[%s206 + $0x18] sm:$0xf]
      %v237 = vld [vmem:[%s206 + $0x1c] sm:$0xf]
      %v238 = vld [vmem:[%s206 + $0x20] sm:$0xf]
      %v239 = vld [vmem:[%s206 + $0x24] sm:$0xf]
      %v240 = vld [vmem:[%s206 + $0x28] sm:$0xf]
      %v241 = vld [vmem:[%s206 + $0x2c] sm:$0xf]
      %v242 = vld [vmem:[%s206 + $0x30] sm:$0xf]
      %v243 = vld [vmem:[%s206 + $0x34] sm:$0xf]
      %v244 = vld [vmem:[%s206 + $0x38] sm:$0xf]
      %v245 = vld [vmem:[%s206 + $0x3c] sm:$0xf]
      %v246 = vld [vmem:[%s206 + $0x40] sm:$0xf]
      %v247 = vld [vmem:[%s206 + $0x44] sm:$0xf]
      %v248 = vld [vmem:[%s206 + $0x48] sm:$0xf]
      %v249 = vld [vmem:[%s206 + $0x4c] sm:$0xf]
      %v250 = vld [vmem:[%s206 + $0x50] sm:$0xf]
      %v251 = vld [vmem:[%s206 + $0x54] sm:$0xf]
      %v252 = vld [vmem:[%s206 + $0x58] sm:$0xf]
      %v253 = vld [vmem:[%s206 + $0x5c] sm:$0xf]
      %v254 = vld [vmem:[%s206 + $0x60] sm:$0xf]
      %v255 = vld [vmem:[%s206 + $0x64] sm:$0xf]
      %v256 = vld [vmem:[%s206 + $0x68] sm:$0xf]
      %v257 = vld [vmem:[%s206 + $0x6c] sm:$0xf]
      %v258 = vld [vmem:[%s206 + $0x70] sm:$0xf]
      %v259 = vld [vmem:[%s206 + $0x74] sm:$0xf]
      %v260 = vld [vmem:[%s206 + $0x78] sm:$0xf]
      %v261 = vld [vmem:[%s206 + $0x7c] sm:$0xf]
      %v262 = vld [vmem:[%s206 + $0x80] sm:$0xf]
      %v263 = vld [vmem:[%s206 + $0x84] sm:$0xf]
      %v264 = vld [vmem:[%s206 + $0x88] sm:$0xf]
      %v265 = vld [vmem:[%s206 + $0x8c] sm:$0xf]
      %v266 = vld [vmem:[%s206 + $0x90] sm:$0xf]
      %v267 = vld [vmem:[%s206 + $0x94] sm:$0xf]
      %v268 = vld [vmem:[%s206 + $0x98] sm:$0xf]
      %v269 = vld [vmem:[%s206 + $0x9c] sm:$0xf]
      %v270 = vld [vmem:[%s206 + $0xa0] sm:$0xf]
      %v271 = vld [vmem:[%s206 + $0xa4] sm:$0xf]
      %v272 = vld [vmem:[%s206 + $0xa8] sm:$0xf]
      %v273 = vld [vmem:[%s206 + $0xac] sm:$0xf]
      %v274 = vld [vmem:[%s206 + $0xb0] sm:$0xf]
      %v275 = vld [vmem:[%s206 + $0xb4] sm:$0xf]
      %v276 = vld [vmem:[%s206 + $0xb8] sm:$0xf]
      %v277 = vld [vmem:[%s206 + $0xbc] sm:$0xf]
      %v278 = vld [vmem:[%s206 + $0xc0] sm:$0xf]
      %v279 = vld [vmem:[%s206 + $0xc4] sm:$0xf]
      %v280 = vld [vmem:[%s206 + $0xc8] sm:$0xf]
      %v281 = vld [vmem:[%s206 + $0xcc] sm:$0xf]
      %v282 = vld [vmem:[%s206 + $0xd0] sm:$0xf]
      %v283 = vld [vmem:[%s206 + $0xd4] sm:$0xf]
      %v284 = vld [vmem:[%s206 + $0xd8] sm:$0xf]
      %v285 = vld [vmem:[%s206 + $0xdc] sm:$0xf]
      %v286 = vld [vmem:[%s206 + $0xe0] sm:$0xf]
      %v287 = vld [vmem:[%s206 + $0xe4] sm:$0xf]
      %v288 = vld [vmem:[%s206 + $0xe8] sm:$0xf]
      %v289 = vld [vmem:[%s206 + $0xec] sm:$0xf]
      %v290 = vld [vmem:[%s206 + $0xf0] sm:$0xf]
      %v291 = vld [vmem:[%s206 + $0xf4] sm:$0xf]
      %v292 = vld [vmem:[%s206 + $0xf8] sm:$0xf]
      %v293 = vld [vmem:[%s206 + $0xfc] sm:$0xf]
      %v294 = vld [vmem:[%s215] sm:$0xf]
      %v295 = vld [vmem:[%s215 + $0x4] sm:$0xf]
      %v296 = vld [vmem:[%s215 + $0x8] sm:$0xf]
      %v297 = vld [vmem:[%s215 + $0xc] sm:$0xf]
      %v298 = vld [vmem:[%s215 + $0x10] sm:$0xf]
      %v299 = vld [vmem:[%s215 + $0x14] sm:$0xf]
      %v300 = vld [vmem:[%s215 + $0x18] sm:$0xf]
      %v301 = vld [vmem:[%s215 + $0x1c] sm:$0xf]
      %v366 = vunpack.c.l.b16 %v230
      %v367 = vunpack.c.l.b16 %v231
      %v368 = vunpack.c.l.b16 %v232
      %v369 = vunpack.c.l.b16 %v233
      %v370 = vunpack.c.l.b16 %v234
      %v371 = vunpack.c.l.b16 %v235
      %v372 = vunpack.c.l.b16 %v236
      %v373 = vunpack.c.l.b16 %v237
      %v374 = vunpack.c.l.b16 %v238
      %v375 = vunpack.c.l.b16 %v239
      %v376 = vunpack.c.l.b16 %v240
      %v377 = vunpack.c.l.b16 %v241
      %v378 = vunpack.c.l.b16 %v242
      %v379 = vunpack.c.l.b16 %v243
      %v380 = vunpack.c.l.b16 %v244
      %v381 = vunpack.c.l.b16 %v245
      %v382 = vunpack.c.l.b16 %v246
      %v383 = vunpack.c.l.b16 %v247
      %v384 = vunpack.c.l.b16 %v248
      %v385 = vunpack.c.l.b16 %v249
      %v386 = vunpack.c.l.b16 %v250
      %v387 = vunpack.c.l.b16 %v251
      %v388 = vunpack.c.l.b16 %v252
      %v389 = vunpack.c.l.b16 %v253
      %v390 = vunpack.c.l.b16 %v254
      %v391 = vunpack.c.l.b16 %v255
      %v392 = vunpack.c.l.b16 %v256
      %v393 = vunpack.c.l.b16 %v257
      %v394 = vunpack.c.l.b16 %v258
      %v395 = vunpack.c.l.b16 %v259
      %v396 = vunpack.c.l.b16 %v260
      %v397 = vunpack.c.l.b16 %v261
      %v398 = vunpack.c.l.b16 %v262
      %v399 = vunpack.c.l.b16 %v263
      %v400 = vunpack.c.l.b16 %v264
      %v401 = vunpack.c.l.b16 %v265
      %v402 = vunpack.c.l.b16 %v266
      %v403 = vunpack.c.l.b16 %v267
      %v404 = vunpack.c.l.b16 %v268
      %v405 = vunpack.c.l.b16 %v269
      %v406 = vunpack.c.l.b16 %v270
      %v407 = vunpack.c.l.b16 %v271
      %v408 = vunpack.c.l.b16 %v272
      %v409 = vunpack.c.l.b16 %v273
      %v410 = vunpack.c.l.b16 %v274
      %v411 = vunpack.c.l.b16 %v275
      %v412 = vunpack.c.l.b16 %v276
      %v413 = vunpack.c.l.b16 %v277
      %v414 = vunpack.c.l.b16 %v278
      %v415 = vunpack.c.l.b16 %v279
      %v416 = vunpack.c.l.b16 %v280
      %v417 = vunpack.c.l.b16 %v281
      %v418 = vunpack.c.l.b16 %v282
      %v419 = vunpack.c.l.b16 %v283
      %v420 = vunpack.c.l.b16 %v284
      %v421 = vunpack.c.l.b16 %v285
      %v422 = vunpack.c.l.b16 %v286
      %v423 = vunpack.c.l.b16 %v287
      %v424 = vunpack.c.l.b16 %v288
      %v425 = vunpack.c.l.b16 %v289
      %v426 = vunpack.c.l.b16 %v290
      %v427 = vunpack.c.l.b16 %v291
      %v428 = vunpack.c.l.b16 %v292
      %v429 = vunpack.c.l.b16 %v293
      %v430 = vpack.c.b16 %v367, %v366
      %v431 = vpack.c.b16 %v369, %v368
      %v432 = vpack.c.b16 %v371, %v370
      %v433 = vpack.c.b16 %v373, %v372
      %v434 = vpack.c.b16 %v375, %v374
      %v435 = vpack.c.b16 %v377, %v376
      %v436 = vpack.c.b16 %v379, %v378
      %v437 = vpack.c.b16 %v381, %v380
      %v438 = vpack.c.b16 %v383, %v382
      %v439 = vpack.c.b16 %v385, %v384
      %v440 = vpack.c.b16 %v387, %v386
      %v441 = vpack.c.b16 %v389, %v388
      %v442 = vpack.c.b16 %v391, %v390
      %v443 = vpack.c.b16 %v393, %v392
      %v444 = vpack.c.b16 %v395, %v394
      %v445 = vpack.c.b16 %v397, %v396
      %v446 = vpack.c.b16 %v399, %v398
      %v447 = vpack.c.b16 %v401, %v400
      %v448 = vpack.c.b16 %v403, %v402
      %v449 = vpack.c.b16 %v405, %v404
      %v450 = vpack.c.b16 %v407, %v406
      %v451 = vpack.c.b16 %v409, %v408
      %v452 = vpack.c.b16 %v411, %v410
      %v453 = vpack.c.b16 %v413, %v412
      %v454 = vpack.c.b16 %v415, %v414
      %v455 = vpack.c.b16 %v417, %v416
      %v456 = vpack.c.b16 %v419, %v418
      %v457 = vpack.c.b16 %v421, %v420
      %v458 = vpack.c.b16 %v423, %v422
      %v459 = vpack.c.b16 %v425, %v424
      %v460 = vpack.c.b16 %v427, %v426
      %v461 = vpack.c.b16 %v429, %v428
      %v470 = vunpack.c.l.b16 %v294
      %v471 = vunpack.c.l.b16 %v295
      %v472 = vunpack.c.l.b16 %v296
      %v473 = vunpack.c.l.b16 %v297
      %v474 = vunpack.c.l.b16 %v298
      %v475 = vunpack.c.l.b16 %v299
      %v476 = vunpack.c.l.b16 %v300
      %v477 = vunpack.c.l.b16 %v301
      %v478 = vpack.c.b16 %v471, %v470
      %v479 = vpack.c.b16 %v473, %v472
      %v480 = vpack.c.b16 %v475, %v474
      %v481 = vpack.c.b16 %v477, %v476
      %vm486 = vcmask 523264
      %v488 = vsel %vm486, %v430, 0
      %v491 = vsel %vm486, %v431, 0
      %v494 = vsel %vm486, %v432, 0
      %v497 = vsel %vm486, %v433, 0
      %v500 = vsel %vm486, %v434, 0
      %v503 = vsel %vm486, %v435, 0
      %v506 = vsel %vm486, %v436, 0
      %v509 = vsel %vm486, %v437, 0
      %v512 = vsel %vm486, %v438, 0
      %v515 = vsel %vm486, %v439, 0
      %v518 = vsel %vm486, %v440, 0
      %v521 = vsel %vm486, %v441, 0
      %v524 = vsel %vm486, %v442, 0
      %v527 = vsel %vm486, %v443, 0
      %v530 = vsel %vm486, %v444, 0
      %v533 = vsel %vm486, %v445, 0
      %v536 = vsel %vm486, %v446, 0
      %v539 = vsel %vm486, %v447, 0
      %v542 = vsel %vm486, %v448, 0
      %v545 = vsel %vm486, %v449, 0
      %v548 = vsel %vm486, %v450, 0
      %v551 = vsel %vm486, %v451, 0
      %v554 = vsel %vm486, %v452, 0
      %v557 = vsel %vm486, %v453, 0
      %v560 = vsel %vm486, %v454, 0
      %v563 = vsel %vm486, %v455, 0
      %v566 = vsel %vm486, %v456, 0
      %v569 = vsel %vm486, %v457, 0
      %v572 = vsel %vm486, %v458, 0
      %v575 = vsel %vm486, %v459, 0
      %v578 = vsel %vm486, %v460, 0
      %v581 = vsel %vm486, %v461, 0
      %583 = vmatprep.subr.bf16.mxu0 0
      %584 = vmatpush1.bf16.msra.mxu0 %v478
      %585 = vmatprep.subr.bf16.mxu0 0
      %586 = vmatpush1.bf16.msra.mxu0 %v479
      %587 = vmatprep.subr.bf16.mxu0 0
      %588 = vmatpush1.bf16.msra.mxu0 %v480
      %589 = vmatprep.subr.bf16.mxu0 0
      %590 = vmatpush1.bf16.msra.mxu0 %v481
      %591 = vmatprep.subr.bf16.mxu0 0
      %592 = vmatpush1.bf16.msra.mxu0 0
      %593 = vmatprep.subr.bf16.mxu0 0
      %594 = vmatpush1.bf16.msra.mxu0 0
      %595 = vmatprep.subr.bf16.mxu0 0
      %596 = vmatpush1.bf16.msra.mxu0 0
      %597 = vmatprep.subr.bf16.mxu0 0
      %598 = vmatpush1.bf16.msra.mxu0 0
      %599 = vmatprep.subr.bf16.mxu0 0
      %600 = vmatpush1.bf16.msra.mxu0 0
      %601 = vmatprep.subr.bf16.mxu0 0
      %602 = vmatpush1.bf16.msra.mxu0 0
      %603 = vmatprep.subr.bf16.mxu0 0
      %604 = vmatpush1.bf16.msra.mxu0 0
      %605 = vmatprep.subr.bf16.mxu0 0
      %606 = vmatpush1.bf16.msra.mxu0 0
      %607 = vmatprep.subr.bf16.mxu0 0
      %608 = vmatpush1.bf16.msra.mxu0 0
      %609 = vmatprep.subr.bf16.mxu0 0
      %610 = vmatpush1.bf16.msra.mxu0 0
      %611 = vmatprep.subr.bf16.mxu0 0
      %612 = vmatpush1.bf16.msra.mxu0 0
      %613 = vmatprep.subr.bf16.mxu0 0
      %614 = vmatpush1.bf16.msra.mxu0 0
      %615 = vmatprep.mubr.bf16.mxu0 0
      %616 = vmatmul.mubr.bf16.gmra.mrb[0].mxu0 %v488
      %v617 = vpop.f32.mrb[0].mxu0
      %v618 = vadd.f32 0.0, %v617
      %v619 = vpop.f32.mrb[0].mxu0
      %v620 = vpop.f32.mrb[0].mxu0
      %v621 = vadd.f32 0.0, %v620
      %v622 = vpop.f32.mrb[0].mxu0
      %623 = vmatprep.mubr.bf16.mxu0 0
      %624 = vmatmul.mubr.bf16.gmra.mrb[0].mxu0 %v491
      %v625 = vpop.f32.mrb[0].mxu0
      %v626 = vadd.f32 0.0, %v625
      %v627 = vpop.f32.mrb[0].mxu0
      %v628 = vpop.f32.mrb[0].mxu0
      %v629 = vadd.f32 0.0, %v628
      %v630 = vpop.f32.mrb[0].mxu0
      %631 = vmatprep.mubr.bf16.mxu0 0
      %632 = vmatmul.mubr.bf16.gmra.mrb[0].mxu0 %v494
      %v633 = vpop.f32.mrb[0].mxu0
      %v634 = vadd.f32 0.0, %v633
      %v635 = vpop.f32.mrb[0].mxu0
      %v636 = vpop.f32.mrb[0].mxu0
      %v637 = vadd.f32 0.0, %v636
      %v638 = vpop.f32.mrb[0].mxu0
      %639 = vmatprep.mubr.bf16.mxu0 0
      %640 = vmatmul.mubr.bf16.gmra.mrb[0].mxu0 %v497
      %v641 = vpop.f32.mrb[0].mxu0
      %v642 = vadd.f32 0.0, %v641
      %v643 = vpop.f32.mrb[0].mxu0
      %v644 = vpop.f32.mrb[0].mxu0
      %v645 = vadd.f32 0.0, %v644
      %v646 = vpop.f32.mrb[0].mxu0
      %647 = vmatprep.mubr.bf16.mxu0 0
      %648 = vmatmul.mubr.bf16.gmra.mrb[0].mxu0 %v500
      %v649 = vpop.f32.mrb[0].mxu0
      %v650 = vadd.f32 0.0, %v649
      %v651 = vpop.f32.mrb[0].mxu0
      %v652 = vpop.f32.mrb[0].mxu0
      %v653 = vadd.f32 0.0, %v652
      %v654 = vpop.f32.mrb[0].mxu0
      %655 = vmatprep.mubr.bf16.mxu0 0
      %656 = vmatmul.mubr.bf16.gmra.mrb[0].mxu0 %v503
      %v657 = vpop.f32.mrb[0].mxu0
      %v658 = vadd.f32 0.0, %v657
      %v659 = vpop.f32.mrb[0].mxu0
      %v660 = vpop.f32.mrb[0].mxu0
      %v661 = vadd.f32 0.0, %v660
      %v662 = vpop.f32.mrb[0].mxu0
      %663 = vmatprep.mubr.bf16.mxu0 0
      %664 = vmatmul.mubr.bf16.gmra.mrb[0].mxu0 %v506
      %v665 = vpop.f32.mrb[0].mxu0
      %v666 = vadd.f32 0.0, %v665
      %v667 = vpop.f32.mrb[0].mxu0
      %v668 = vpop.f32.mrb[0].mxu0
      %v669 = vadd.f32 0.0, %v668
      %v670 = vpop.f32.mrb[0].mxu0
      %671 = vmatprep.mubr.bf16.mxu0 0
      %672 = vmatmul.mubr.bf16.gmra.mrb[0].mxu0 %v509
      %v673 = vpop.f32.mrb[0].mxu0
      %v674 = vadd.f32 0.0, %v673
      %v675 = vpop.f32.mrb[0].mxu0
      %v676 = vpop.f32.mrb[0].mxu0
      %v677 = vadd.f32 0.0, %v676
      %v678 = vpop.f32.mrb[0].mxu0
      %679 = vmatprep.mubr.bf16.mxu0 0
      %680 = vmatmul.mubr.bf16.gmra.mrb[0].mxu0 %v512
      %v681 = vpop.f32.mrb[0].mxu0
      %v682 = vadd.f32 0.0, %v681
      %v683 = vpop.f32.mrb[0].mxu0
      %v684 = vpop.f32.mrb[0].mxu0
      %v685 = vadd.f32 0.0, %v684
      %v686 = vpop.f32.mrb[0].mxu0
      %687 = vmatprep.mubr.bf16.mxu0 0
      %688 = vmatmul.mubr.bf16.gmra.mrb[0].mxu0 %v515
      %v689 = vpop.f32.mrb[0].mxu0
      %v690 = vadd.f32 0.0, %v689
      %v691 = vpop.f32.mrb[0].mxu0
      %v692 = vpop.f32.mrb[0].mxu0
      %v693 = vadd.f32 0.0, %v692
      %v694 = vpop.f32.mrb[0].mxu0
      %695 = vmatprep.mubr.bf16.mxu0 0
      %696 = vmatmul.mubr.bf16.gmra.mrb[0].mxu0 %v518
      %v697 = vpop.f32.mrb[0].mxu0
      %v698 = vadd.f32 0.0, %v697
      %v699 = vpop.f32.mrb[0].mxu0
      %v700 = vpop.f32.mrb[0].mxu0
      %v701 = vadd.f32 0.0, %v700
      %v702 = vpop.f32.mrb[0].mxu0
      %703 = vmatprep.mubr.bf16.mxu0 0
      %704 = vmatmul.mubr.bf16.gmra.mrb[0].mxu0 %v521
      %v705 = vpop.f32.mrb[0].mxu0
      %v706 = vadd.f32 0.0, %v705
      %v707 = vpop.f32.mrb[0].mxu0
      %v708 = vpop.f32.mrb[0].mxu0
      %v709 = vadd.f32 0.0, %v708
      %v710 = vpop.f32.mrb[0].mxu0
      %711 = vmatprep.mubr.bf16.mxu0 0
      %712 = vmatmul.mubr.bf16.gmra.mrb[0].mxu0 %v524
      %v713 = vpop.f32.mrb[0].mxu0
      %v714 = vadd.f32 0.0, %v713
      %v715 = vpop.f32.mrb[0].mxu0
      %v716 = vpop.f32.mrb[0].mxu0
      %v717 = vadd.f32 0.0, %v716
      %v718 = vpop.f32.mrb[0].mxu0
      %719 = vmatprep.mubr.bf16.mxu0 0
      %720 = vmatmul.mubr.bf16.gmra.mrb[0].mxu0 %v527
      %v721 = vpop.f32.mrb[0].mxu0
      %v722 = vadd.f32 0.0, %v721
      %v723 = vpop.f32.mrb[0].mxu0
      %v724 = vpop.f32.mrb[0].mxu0
      %v725 = vadd.f32 0.0, %v724
      %v726 = vpop.f32.mrb[0].mxu0
      %727 = vmatprep.mubr.bf16.mxu0 0
      %728 = vmatmul.mubr.bf16.gmra.mrb[0].mxu0 %v530
      %v729 = vpop.f32.mrb[0].mxu0
      %v730 = vadd.f32 0.0, %v729
      %v731 = vpop.f32.mrb[0].mxu0
      %v732 = vpop.f32.mrb[0].mxu0
      %v733 = vadd.f32 0.0, %v732
      %v734 = vpop.f32.mrb[0].mxu0
      %735 = vmatprep.mubr.bf16.mxu0 0
      %736 = vmatmul.mubr.bf16.gmra.mrb[0].mxu0 %v533
      %v737 = vpop.f32.mrb[0].mxu0
      %v738 = vadd.f32 0.0, %v737
      %v739 = vpop.f32.mrb[0].mxu0
      %v740 = vpop.f32.mrb[0].mxu0
      %v741 = vadd.f32 0.0, %v740
      %v742 = vpop.f32.mrb[0].mxu0
      %743 = vmatprep.mubr.bf16.mxu0 0
      %744 = vmatmul.mubr.bf16.gmra.mrb[0].mxu0 %v536
      %v745 = vpop.f32.mrb[0].mxu0
      %v746 = vadd.f32 0.0, %v745
      %v747 = vpop.f32.mrb[0].mxu0
      %v748 = vpop.f32.mrb[0].mxu0
      %v749 = vadd.f32 0.0, %v748
      %v750 = vpop.f32.mrb[0].mxu0
      %751 = vmatprep.mubr.bf16.mxu0 0
      %752 = vmatmul.mubr.bf16.gmra.mrb[0].mxu0 %v539
      %v753 = vpop.f32.mrb[0].mxu0
      %v754 = vadd.f32 0.0, %v753
      %v755 = vpop.f32.mrb[0].mxu0
      %v756 = vpop.f32.mrb[0].mxu0
      %v757 = vadd.f32 0.0, %v756
      %v758 = vpop.f32.mrb[0].mxu0
      %759 = vmatprep.mubr.bf16.mxu0 0
      %760 = vmatmul.mubr.bf16.gmra.mrb[0].mxu0 %v542
      %v761 = vpop.f32.mrb[0].mxu0
      %v762 = vadd.f32 0.0, %v761
      %v763 = vpop.f32.mrb[0].mxu0
      %v764 = vpop.f32.mrb[0].mxu0
      %v765 = vadd.f32 0.0, %v764
      %v766 = vpop.f32.mrb[0].mxu0
      %767 = vmatprep.mubr.bf16.mxu0 0
      %768 = vmatmul.mubr.bf16.gmra.mrb[0].mxu0 %v545
      %v769 = vpop.f32.mrb[0].mxu0
      %v770 = vadd.f32 0.0, %v769
      %v771 = vpop.f32.mrb[0].mxu0
      %v772 = vpop.f32.mrb[0].mxu0
      %v773 = vadd.f32 0.0, %v772
      %v774 = vpop.f32.mrb[0].mxu0
      %775 = vmatprep.mubr.bf16.mxu0 0
      %776 = vmatmul.mubr.bf16.gmra.mrb[0].mxu0 %v548
      %v777 = vpop.f32.mrb[0].mxu0
      %v778 = vadd.f32 0.0, %v777
      %v779 = vpop.f32.mrb[0].mxu0
      %v780 = vpop.f32.mrb[0].mxu0
      %v781 = vadd.f32 0.0, %v780
      %v782 = vpop.f32.mrb[0].mxu0
      %783 = vmatprep.mubr.bf16.mxu0 0
      %784 = vmatmul.mubr.bf16.gmra.mrb[0].mxu0 %v551
      %v785 = vpop.f32.mrb[0].mxu0
      %v786 = vadd.f32 0.0, %v785
      %v787 = vpop.f32.mrb[0].mxu0
      %v788 = vpop.f32.mrb[0].mxu0
      %v789 = vadd.f32 0.0, %v788
      %v790 = vpop.f32.mrb[0].mxu0
      %791 = vmatprep.mubr.bf16.mxu0 0
      %792 = vmatmul.mubr.bf16.gmra.mrb[0].mxu0 %v554
      %v793 = vpop.f32.mrb[0].mxu0
      %v794 = vadd.f32 0.0, %v793
      %v795 = vpop.f32.mrb[0].mxu0
      %v796 = vpop.f32.mrb[0].mxu0
      %v797 = vadd.f32 0.0, %v796
      %v798 = vpop.f32.mrb[0].mxu0
      %799 = vmatprep.mubr.bf16.mxu0 0
      %800 = vmatmul.mubr.bf16.gmra.mrb[0].mxu0 %v557
      %v801 = vpop.f32.mrb[0].mxu0
      %v802 = vadd.f32 0.0, %v801
      %v803 = vpop.f32.mrb[0].mxu0
      %v804 = vpop.f32.mrb[0].mxu0
      %v805 = vadd.f32 0.0, %v804
      %v806 = vpop.f32.mrb[0].mxu0
      %807 = vmatprep.mubr.bf16.mxu0 0
      %808 = vmatmul.mubr.bf16.gmra.mrb[0].mxu0 %v560
      %v809 = vpop.f32.mrb[0].mxu0
      %v810 = vadd.f32 0.0, %v809
      %v811 = vpop.f32.mrb[0].mxu0
      %v812 = vpop.f32.mrb[0].mxu0
      %v813 = vadd.f32 0.0, %v812
      %v814 = vpop.f32.mrb[0].mxu0
      %815 = vmatprep.mubr.bf16.mxu0 0
      %816 = vmatmul.mubr.bf16.gmra.mrb[0].mxu0 %v563
      %v817 = vpop.f32.mrb[0].mxu0
      %v818 = vadd.f32 0.0, %v817
      %v819 = vpop.f32.mrb[0].mxu0
      %v820 = vpop.f32.mrb[0].mxu0
      %v821 = vadd.f32 0.0, %v820
      %v822 = vpop.f32.mrb[0].mxu0
      %823 = vmatprep.mubr.bf16.mxu0 0
      %824 = vmatmul.mubr.bf16.gmra.mrb[0].mxu0 %v566
      %v825 = vpop.f32.mrb[0].mxu0
      %v826 = vadd.f32 0.0, %v825
      %v827 = vpop.f32.mrb[0].mxu0
      %v828 = vpop.f32.mrb[0].mxu0
      %v829 = vadd.f32 0.0, %v828
      %v830 = vpop.f32.mrb[0].mxu0
      %831 = vmatprep.mubr.bf16.mxu0 0
      %832 = vmatmul.mubr.bf16.gmra.mrb[0].mxu0 %v569
      %v833 = vpop.f32.mrb[0].mxu0
      %v834 = vadd.f32 0.0, %v833
      %v835 = vpop.f32.mrb[0].mxu0
      %v836 = vpop.f32.mrb[0].mxu0
      %v837 = vadd.f32 0.0, %v836
      %v838 = vpop.f32.mrb[0].mxu0
      %839 = vmatprep.mubr.bf16.mxu0 0
      %840 = vmatmul.mubr.bf16.gmra.mrb[0].mxu0 %v572
      %v841 = vpop.f32.mrb[0].mxu0
      %v842 = vadd.f32 0.0, %v841
      %v843 = vpop.f32.mrb[0].mxu0
      %v844 = vpop.f32.mrb[0].mxu0
      %v845 = vadd.f32 0.0, %v844
      %v846 = vpop.f32.mrb[0].mxu0
      %847 = vmatprep.mubr.bf16.mxu0 0
      %848 = vmatmul.mubr.bf16.gmra.mrb[0].mxu0 %v575
      %v849 = vpop.f32.mrb[0].mxu0
      %v850 = vadd.f32 0.0, %v849
      %v851 = vpop.f32.mrb[0].mxu0
      %v852 = vpop.f32.mrb[0].mxu0
      %v853 = vadd.f32 0.0, %v852
      %v854 = vpop.f32.mrb[0].mxu0
      %855 = vmatprep.mubr.bf16.mxu0 0
      %856 = vmatmul.mubr.bf16.gmra.mrb[0].mxu0 %v578
      %v857 = vpop.f32.mrb[0].mxu0
      %v858 = vadd.f32 0.0, %v857
      %v859 = vpop.f32.mrb[0].mxu0
      %v860 = vpop.f32.mrb[0].mxu0
      %v861 = vadd.f32 0.0, %v860
      %v862 = vpop.f32.mrb[0].mxu0
      %863 = vmatprep.mubr.bf16.mxu0 0
      %864 = vmatmul.mubr.bf16.gmra.mrb[0].mxu0 %v581
      %v865 = vpop.f32.mrb[0].mxu0
      %v866 = vadd.f32 0.0, %v865
      %v867 = vpop.f32.mrb[0].mxu0
      %v868 = vpop.f32.mrb[0].mxu0
      %v869 = vadd.f32 0.0, %v868
      %v870 = vpop.f32.mrb[0].mxu0
      %871 = vdwg.mxu0
      %v872 = vpack.c.bf16 %v621, %v618
      %v873 = vpack.c.bf16 %v629, %v626
      %v874 = vpack.c.bf16 %v637, %v634
      %v875 = vpack.c.bf16 %v645, %v642
      %v876 = vpack.c.bf16 %v653, %v650
      %v877 = vpack.c.bf16 %v661, %v658
      %v878 = vpack.c.bf16 %v669, %v666
      %v879 = vpack.c.bf16 %v677, %v674
      %v880 = vpack.c.bf16 %v685, %v682
      %v881 = vpack.c.bf16 %v693, %v690
      %v882 = vpack.c.bf16 %v701, %v698
      %v883 = vpack.c.bf16 %v709, %v706
      %v884 = vpack.c.bf16 %v717, %v714
      %v885 = vpack.c.bf16 %v725, %v722
      %v886 = vpack.c.bf16 %v733, %v730
      %v887 = vpack.c.bf16 %v741, %v738
      %v888 = vpack.c.bf16 %v749, %v746
      %v889 = vpack.c.bf16 %v757, %v754
      %v890 = vpack.c.bf16 %v765, %v762
      %v891 = vpack.c.bf16 %v773, %v770
      %v892 = vpack.c.bf16 %v781, %v778
      %v893 = vpack.c.bf16 %v789, %v786
      %v894 = vpack.c.bf16 %v797, %v794
      %v895 = vpack.c.bf16 %v805, %v802
      %v896 = vpack.c.bf16 %v813, %v810
      %v897 = vpack.c.bf16 %v821, %v818
      %v898 = vpack.c.bf16 %v829, %v826
      %v899 = vpack.c.bf16 %v837, %v834
      %v900 = vpack.c.bf16 %v845, %v842
      %v901 = vpack.c.bf16 %v853, %v850
      %v902 = vpack.c.bf16 %v861, %v858
      %v903 = vpack.c.bf16 %v869, %v866
      %v936 = vunpack.c.l.b16 %v872
      %v937 = vunpack.c.h.b16 %v872
      %v938 = vunpack.c.l.b16 %v873
      %v939 = vunpack.c.h.b16 %v873
      %v940 = vunpack.c.l.b16 %v874
      %v941 = vunpack.c.h.b16 %v874
      %v942 = vunpack.c.l.b16 %v875
      %v943 = vunpack.c.h.b16 %v875
      %v944 = vunpack.c.l.b16 %v876
      %v945 = vunpack.c.h.b16 %v876
      %v946 = vunpack.c.l.b16 %v877
      %v947 = vunpack.c.h.b16 %v877
      %v948 = vunpack.c.l.b16 %v878
      %v949 = vunpack.c.h.b16 %v878
      %v950 = vunpack.c.l.b16 %v879
      %v951 = vunpack.c.h.b16 %v879
      %v952 = vunpack.c.l.b16 %v880
      %v953 = vunpack.c.h.b16 %v880
      %v954 = vunpack.c.l.b16 %v881
      %v955 = vunpack.c.h.b16 %v881
      %v956 = vunpack.c.l.b16 %v882
      %v957 = vunpack.c.h.b16 %v882
      %v958 = vunpack.c.l.b16 %v883
      %v959 = vunpack.c.h.b16 %v883
      %v960 = vunpack.c.l.b16 %v884
      %v961 = vunpack.c.h.b16 %v884
      %v962 = vunpack.c.l.b16 %v885
      %v963 = vunpack.c.h.b16 %v885
      %v964 = vunpack.c.l.b16 %v886
      %v965 = vunpack.c.h.b16 %v886
      %v966 = vunpack.c.l.b16 %v887
      %v967 = vunpack.c.h.b16 %v887
      %v968 = vunpack.c.l.b16 %v888
      %v969 = vunpack.c.h.b16 %v888
      %v970 = vunpack.c.l.b16 %v889
      %v971 = vunpack.c.h.b16 %v889
      %v972 = vunpack.c.l.b16 %v890
      %v973 = vunpack.c.h.b16 %v890
      %v974 = vunpack.c.l.b16 %v891
      %v975 = vunpack.c.h.b16 %v891
      %v976 = vunpack.c.l.b16 %v892
      %v977 = vunpack.c.h.b16 %v892
      %v978 = vunpack.c.l.b16 %v893
      %v979 = vunpack.c.h.b16 %v893
      %v980 = vunpack.c.l.b16 %v894
      %v981 = vunpack.c.h.b16 %v894
      %v982 = vunpack.c.l.b16 %v895
      %v983 = vunpack.c.h.b16 %v895
      %v984 = vunpack.c.l.b16 %v896
      %v985 = vunpack.c.h.b16 %v896
      %v986 = vunpack.c.l.b16 %v897
      %v987 = vunpack.c.h.b16 %v897
      %v988 = vunpack.c.l.b16 %v898
      %v989 = vunpack.c.h.b16 %v898
      %v990 = vunpack.c.l.b16 %v899
      %v991 = vunpack.c.h.b16 %v899
      %v992 = vunpack.c.l.b16 %v900
      %v993 = vunpack.c.h.b16 %v900
      %v994 = vunpack.c.l.b16 %v901
      %v995 = vunpack.c.h.b16 %v901
      %v996 = vunpack.c.l.b16 %v902
      %v997 = vunpack.c.h.b16 %v902
      %v998 = vunpack.c.l.b16 %v903
      %v999 = vunpack.c.h.b16 %v903
      %v1000 = vpack.c.b16 %v936, %v936
      %v1001 = vpack.c.b16 %v937, %v937
      %v1002 = vpack.c.b16 %v938, %v938
      %v1003 = vpack.c.b16 %v939, %v939
      %v1004 = vpack.c.b16 %v940, %v940
      %v1005 = vpack.c.b16 %v941, %v941
      %v1006 = vpack.c.b16 %v942, %v942
      %v1007 = vpack.c.b16 %v943, %v943
      %v1008 = vpack.c.b16 %v944, %v944
      %v1009 = vpack.c.b16 %v945, %v945
      %v1010 = vpack.c.b16 %v946, %v946
      %v1011 = vpack.c.b16 %v947, %v947
      %v1012 = vpack.c.b16 %v948, %v948
      %v1013 = vpack.c.b16 %v949, %v949
      %v1014 = vpack.c.b16 %v950, %v950
      %v1015 = vpack.c.b16 %v951, %v951
      %v1016 = vpack.c.b16 %v952, %v952
      %v1017 = vpack.c.b16 %v953, %v953
      %v1018 = vpack.c.b16 %v954, %v954
      %v1019 = vpack.c.b16 %v955, %v955
      %v1020 = vpack.c.b16 %v956, %v956
      %v1021 = vpack.c.b16 %v957, %v957
      %v1022 = vpack.c.b16 %v958, %v958
      %v1023 = vpack.c.b16 %v959, %v959
      %v1024 = vpack.c.b16 %v960, %v960
      %v1025 = vpack.c.b16 %v961, %v961
      %v1026 = vpack.c.b16 %v962, %v962
      %v1027 = vpack.c.b16 %v963, %v963
      %v1028 = vpack.c.b16 %v964, %v964
      %v1029 = vpack.c.b16 %v965, %v965
      %v1030 = vpack.c.b16 %v966, %v966
      %v1031 = vpack.c.b16 %v967, %v967
      %v1032 = vpack.c.b16 %v968, %v968
      %v1033 = vpack.c.b16 %v969, %v969
      %v1034 = vpack.c.b16 %v970, %v970
      %v1035 = vpack.c.b16 %v971, %v971
      %v1036 = vpack.c.b16 %v972, %v972
      %v1037 = vpack.c.b16 %v973, %v973
      %v1038 = vpack.c.b16 %v974, %v974
      %v1039 = vpack.c.b16 %v975, %v975
      %v1040 = vpack.c.b16 %v976, %v976
      %v1041 = vpack.c.b16 %v977, %v977
      %v1042 = vpack.c.b16 %v978, %v978
      %v1043 = vpack.c.b16 %v979, %v979
      %v1044 = vpack.c.b16 %v980, %v980
      %v1045 = vpack.c.b16 %v981, %v981
      %v1046 = vpack.c.b16 %v982, %v982
      %v1047 = vpack.c.b16 %v983, %v983
      %v1048 = vpack.c.b16 %v984, %v984
      %v1049 = vpack.c.b16 %v985, %v985
      %v1050 = vpack.c.b16 %v986, %v986
      %v1051 = vpack.c.b16 %v987, %v987
      %v1052 = vpack.c.b16 %v988, %v988
      %v1053 = vpack.c.b16 %v989, %v989
      %v1054 = vpack.c.b16 %v990, %v990
      %v1055 = vpack.c.b16 %v991, %v991
      %v1056 = vpack.c.b16 %v992, %v992
      %v1057 = vpack.c.b16 %v993, %v993
      %v1058 = vpack.c.b16 %v994, %v994
      %v1059 = vpack.c.b16 %v995, %v995
      %v1060 = vpack.c.b16 %v996, %v996
      %v1061 = vpack.c.b16 %v997, %v997
      %v1062 = vpack.c.b16 %v998, %v998
      %v1063 = vpack.c.b16 %v999, %v999
      %1128 = vst [vmem:[%s227] sm:$0xf] %v1000
      %1129 = vst [vmem:[%s227 + $0x4] sm:$0xf] %v1001
      %1130 = vst [vmem:[%s227 + $0x8] sm:$0xf] %v1002
      %1131 = vst [vmem:[%s227 + $0xc] sm:$0xf] %v1003
      %1132 = vst [vmem:[%s227 + $0x10] sm:$0xf] %v1004
      %1133 = vst [vmem:[%s227 + $0x14] sm:$0xf] %v1005
      %1134 = vst [vmem:[%s227 + $0x18] sm:$0xf] %v1006
      %1135 = vst [vmem:[%s227 + $0x1c] sm:$0xf] %v1007
      %1136 = vst [vmem:[%s227 + $0x20] sm:$0xf] %v1008
      %1137 = vst [vmem:[%s227 + $0x24] sm:$0xf] %v1009
      %1138 = vst [vmem:[%s227 + $0x28] sm:$0xf] %v1010
      %1139 = vst [vmem:[%s227 + $0x2c] sm:$0xf] %v1011
      %1140 = vst [vmem:[%s227 + $0x30] sm:$0xf] %v1012
      %1141 = vst [vmem:[%s227 + $0x34] sm:$0xf] %v1013
      %1142 = vst [vmem:[%s227 + $0x38] sm:$0xf] %v1014
      %1143 = vst [vmem:[%s227 + $0x3c] sm:$0xf] %v1015
      %1144 = vst [vmem:[%s227 + $0x40] sm:$0xf] %v1016
      %1145 = vst [vmem:[%s227 + $0x44] sm:$0xf] %v1017
      %1146 = vst [vmem:[%s227 + $0x48] sm:$0xf] %v1018
      %1147 = vst [vmem:[%s227 + $0x4c] sm:$0xf] %v1019
      %1148 = vst [vmem:[%s227 + $0x50] sm:$0xf] %v1020
      %1149 = vst [vmem:[%s227 + $0x54] sm:$0xf] %v1021
      %1150 = vst [vmem:[%s227 + $0x58] sm:$0xf] %v1022
      %1151 = vst [vmem:[%s227 + $0x5c] sm:$0xf] %v1023
      %1152 = vst [vmem:[%s227 + $0x60] sm:$0xf] %v1024
      %1153 = vst [vmem:[%s227 + $0x64] sm:$0xf] %v1025
      %1154 = vst [vmem:[%s227 + $0x68] sm:$0xf] %v1026
      %1155 = vst [vmem:[%s227 + $0x6c] sm:$0xf] %v1027
      %1156 = vst [vmem:[%s227 + $0x70] sm:$0xf] %v1028
      %1157 = vst [vmem:[%s227 + $0x74] sm:$0xf] %v1029
      %1158 = vst [vmem:[%s227 + $0x78] sm:$0xf] %v1030
      %1159 = vst [vmem:[%s227 + $0x7c] sm:$0xf] %v1031
      %1160 = vst [vmem:[%s227 + $0x80] sm:$0xf] %v1032
      %1161 = vst [vmem:[%s227 + $0x84] sm:$0xf] %v1033
      %1162 = vst [vmem:[%s227 + $0x88] sm:$0xf] %v1034
      %1163 = vst [vmem:[%s227 + $0x8c] sm:$0xf] %v1035
      %1164 = vst [vmem:[%s227 + $0x90] sm:$0xf] %v1036
      %1165 = vst [vmem:[%s227 + $0x94] sm:$0xf] %v1037
      %1166 = vst [vmem:[%s227 + $0x98] sm:$0xf] %v1038
      %1167 = vst [vmem:[%s227 + $0x9c] sm:$0xf] %v1039
      %1168 = vst [vmem:[%s227 + $0xa0] sm:$0xf] %v1040
      %1169 = vst [vmem:[%s227 + $0xa4] sm:$0xf] %v1041
      %1170 = vst [vmem:[%s227 + $0xa8] sm:$0xf] %v1042
      %1171 = vst [vmem:[%s227 + $0xac] sm:$0xf] %v1043
      %1172 = vst [vmem:[%s227 + $0xb0] sm:$0xf] %v1044
      %1173 = vst [vmem:[%s227 + $0xb4] sm:$0xf] %v1045
      %1174 = vst [vmem:[%s227 + $0xb8] sm:$0xf] %v1046
      %1175 = vst [vmem:[%s227 + $0xbc] sm:$0xf] %v1047
      %1176 = vst [vmem:[%s227 + $0xc0] sm:$0xf] %v1048
      %1177 = vst [vmem:[%s227 + $0xc4] sm:$0xf] %v1049
      %1178 = vst [vmem:[%s227 + $0xc8] sm:$0xf] %v1050
      %1179 = vst [vmem:[%s227 + $0xcc] sm:$0xf] %v1051
      %1180 = vst [vmem:[%s227 + $0xd0] sm:$0xf] %v1052
      %1181 = vst [vmem:[%s227 + $0xd4] sm:$0xf] %v1053
      %1182 = vst [vmem:[%s227 + $0xd8] sm:$0xf] %v1054
      %1183 = vst [vmem:[%s227 + $0xdc] sm:$0xf] %v1055
      %1184 = vst [vmem:[%s227 + $0xe0] sm:$0xf] %v1056
      %1185 = vst [vmem:[%s227 + $0xe4] sm:$0xf] %v1057
      %1186 = vst [vmem:[%s227 + $0xe8] sm:$0xf] %v1058
      %1187 = vst [vmem:[%s227 + $0xec] sm:$0xf] %v1059
      %1188 = vst [vmem:[%s227 + $0xf0] sm:$0xf] %v1060
      %1189 = vst [vmem:[%s227 + $0xf4] sm:$0xf] %v1061
      %1190 = vst [vmem:[%s227 + $0xf8] sm:$0xf] %v1062
      %1191 = vst [vmem:[%s227 + $0xfc] sm:$0xf] %v1063
      %s1192 = smul.u32 64, %s20
      %p1193 = scmp.lt.s32.totalorder %s18, 1
      %s1194 = scalar_select %p1193, %s18, 1
      %p1195 = scmp.lt.s32.totalorder %s1192, 511
      %s1196 = scalar_select %p1195, %s1192, 511
      %p1197 = scmp.lt.s32.totalorder %s19, 0
      %s1198 = scalar_select %p1197, %s19, 0
      %s1199 = sadd.s32 %s1198, %s1196
      %s1200 = smul.addr %s1194, 512
      %s1201 = sadd.s32 %s1199, %s1200
      %s1202 = smul.addr %s1201, 4
      %s1203 = scalar_lea.vmem %s2, %s1202
      // Predicated region
      $region29: #{search_transfer_pallas.3} parent=27 // pred_check
        %p1204 = pneg %p110
      $region30: #{search_transfer_pallas.3} parent=27 // pred_check_branch
        %1206 = sbr.rel (%p1204) target = $region32
      $region31: #{search_transfer_pallas.3} parent=27 // pred_region
        %s1207 = smul.u32 64, %s20
      $region32: #{search_transfer_pallas.3} parent=27 // pred_fallthru
        _
    $region28: #{search_transfer_pallas.3} parent=5 // pred_fallthru
      _
    %p1208 = scmp.le.s32.totalorder 2, %s8
    // Predicated region
    $region33: #{search_transfer_pallas.3} parent=5 // pred_check
      %p1209 = pneg %p1208
    $region34: #{search_transfer_pallas.3} parent=5 // pred_check_branch
      %1211 = sbr.rel (%p1209) target = $region36
    $region35: #{search_transfer_pallas.3} parent=5 // pred_region
      %s1212 = ssub.s32 %s8, 2
      // Predicated region
      $region37: #{search_transfer_pallas.3} parent=35 // pred_check
        %p1213 = pneg %p116
      $region38: #{search_transfer_pallas.3} parent=35 // pred_check_branch
        %1215 = sbr.rel (%p1213) target = $region40
      $region39: #{search_transfer_pallas.3} parent=35 // pred_region
        %s1216 = smul.u32 64, %s23
        %p1217 = scmp.lt.s32.totalorder %s21, 1
        %s1218 = scalar_select %p1217, %s21, 1
        %p1219 = scmp.lt.s32.totalorder %s1216, 511
        %s1220 = scalar_select %p1219, %s1216, 511
        %p1221 = scmp.lt.s32.totalorder %s22, 0
        %s1222 = scalar_select %p1221, %s22, 0
        %s1223 = sadd.s32 %s1222, %s1220
        %s1224 = smul.addr %s1218, 512
        %s1225 = sadd.s32 %s1223, %s1224
        %s1226 = smul.addr %s1225, 4
        %s1227 = scalar_lea.vmem %s2, %s1226
      $region40: #{search_transfer_pallas.3} parent=35 // pred_fallthru
        _
    $region36: #{search_transfer_pallas.3} parent=5 // pred_fallthru
      _
  $region6: #{search_transfer_pallas.3} parent=0 // loop_footer
    %s12 = sadd.s32 1, %s8
  $region7: #{search_transfer_pallas.3} parent=0 // loop_footer_branch
    %7 = sbr.rel target = $region3
  $region8: #{search_transfer_pallas.3} parent=0 // loop_exit
    _

</llo_original>
